<compile_context>
chip_gen: v7x
topology: tpu7x:2x2x1
jax: 0.10.0
libtpu: 0.0.40
codegen_flags: <defaults>
</compile_context>

<pallas_src>
import functools

import numpy as np

import jax
import jax.numpy as jnp
from jax.experimental import pallas as pl
from jax.experimental.pallas import tpu as pltpu


KSIZE = 5          # all convs in the module are 5x5
PAD = 2            # with padding 2
FEAT = 8           # ConvLSTM hidden features


# ---------------------------------------------------------------------------
# Setup-time helpers (plain XLA / numpy, run once outside the kernel).
# ---------------------------------------------------------------------------
def _pool_interleave_perm(w_out, cout):
    """Column permutation so even-x outputs land in lanes [0, half) and odd-x
    outputs in [half, 2*half): the 2x2 maxpool's W-reduction becomes a max of
    two contiguous lane halves inside the kernel."""
    order = []
    for parity in (0, 1):
        for j in range(w_out // 2):
            x = 2 * j + parity
            order.extend(range(x * cout, x * cout + cout))
    return np.asarray(order, np.int32)


def _banded_conv(w_hwio, w_in, w_out, col_perm=None):
    """Dense conv weights [K,K,Cin,Cout] -> per-kh banded GEMM matrices
    B[kh, w*Cin+ci, x*Cout+co] = w[kh, w-x+PAD, ci, co] (0 outside the band).
    Zero padding along the conv W axis is folded into the band structure."""
    k = w_hwio.shape[0]
    cin, cout = w_hwio.shape[2], w_hwio.shape[3]
    b = jnp.zeros((k, w_in * cin, w_out * cout), jnp.float32)
    for x in range(w_out):
        for kw in range(k):
            w = x + kw - PAD
            if 0 <= w < w_in:
                b = b.at[:, w * cin:(w + 1) * cin,
                         x * cout:(x + 1) * cout].set(w_hwio[:, kw])
    if col_perm is not None:
        b = b[:, :, col_perm]
    return b


def _banded_lstm(wx, wh, w_sp):
    """Banded matrices for the ConvLSTM gate conv on concat([x, h], channel).
    LHS lane packing : [w*Cx+ci | w_sp*Cx + w*F+fh]   (x-part then h-part)
    Output packing   : gate*(w_sp*F) + x*F + f,  gates ordered (i, f, c, o)."""
    k = wx.shape[0]
    cx = wx.shape[2]
    f = wh.shape[2]
    n_in = w_sp * cx + w_sp * f
    n_out = 4 * f * w_sp
    b = jnp.zeros((k, n_in, n_out), jnp.float32)
    for x in range(w_sp):
        for kw in range(k):
            w = x + kw - PAD
            if not (0 <= w < w_sp):
                continue
            for g in range(4):
                cs = g * (w_sp * f) + x * f
                b = b.at[:, w * cx:(w + 1) * cx, cs:cs + f].set(
                    wx[:, kw, :, g * f:(g + 1) * f])
                b = b.at[:, w_sp * cx + w * f:w_sp * cx + (w + 1) * f,
                         cs:cs + f].set(wh[:, kw, :, g * f:(g + 1) * f])
    return b


def _row_pool_selectors(rows_in):
    """0/1 matrices selecting even / odd rows: the maxpool's H-reduction is
    max(E_even @ y, E_odd @ y) — a tiny MXU matmul, no strided/relayout ops."""
    r = np.arange(rows_in)
    s = np.arange(rows_in // 2)
    e = (r[None, :] == 2 * s[:, None]).astype(np.float32)
    o = (r[None, :] == 2 * s[:, None] + 1).astype(np.float32)
    return jnp.asarray(e, jnp.bfloat16), jnp.asarray(o, jnp.bfloat16)


# ---------------------------------------------------------------------------
# The fused per-timestep kernel (grid = (T,), h/c carried in VMEM scratch).
# ---------------------------------------------------------------------------
def _encoder_kernel(x_ref, b1_ref, b2_ref, bg_ref,
                    bias1_ref, bias2_ref, biasg_ref,
                    sele_ref, selo_ref,
                    wci_ref, wcf_ref, wco_ref,
                    h_out_ref, c_out_ref,
                    h_scr, c_scr,
                    *, n, hh, ww, cin, feat):
    h2, w2 = hh // 2, ww // 2
    h4, w4 = hh // 4, ww // 4
    t = pl.program_id(0)

    @pl.when(t == 0)
    def _init():
        h_scr[...] = jnp.zeros_like(h_scr)
        c_scr[...] = jnp.zeros_like(c_scr)

    def mm(a, b):  # bf16 MXU operands, f32 accumulation
        return jnp.dot(a.astype(jnp.bfloat16), b.astype(jnp.bfloat16),
                       preferred_element_type=jnp.float32)

    sel_e = sele_ref[...]
    sel_o = selo_ref[...]

    def pool2x2(y, rows, half):
        # y: [rows, 2*half]; even-x outputs in the first lane half, odd-x in
        # the second (guaranteed by the banded-matrix column permutation).
        wmax = jnp.maximum(y[:, :half], y[:, half:])
        se = sel_e[:rows // 2, :rows]
        so = sel_o[:rows // 2, :rows]
        return jnp.maximum(mm(se, wmax), mm(so, wmax))

    # ---- conv1 (cin -> 4, 5x5, pad 2) + ReLU + 2x2 maxpool ------------------
    xt = x_ref[0]                                     # [n, hh+4, ww*cin] (H pre-padded)
    acc1 = jnp.zeros((n * hh, ww * 4), jnp.float32)
    for kh in range(KSIZE):
        lhs = xt[:, kh:kh + hh, :].reshape(n * hh, ww * cin)
        acc1 = acc1 + mm(lhs, b1_ref[kh])
    acc1 = jnp.maximum(acc1 + bias1_ref[...], 0.0)
    pooled1 = pool2x2(acc1, n * hh, w2 * 4)           # [n*h2, w2*4]

    # ---- conv2 (4 -> 4, 5x5, pad 2) + ReLU + 2x2 maxpool --------------------
    zpad2 = jnp.zeros((PAD, w2 * 4), jnp.float32)
    pg2 = jnp.concatenate(
        sum([[zpad2, pooled1[b * h2:(b + 1) * h2, :], zpad2] for b in range(n)], []),
        axis=0)                                       # [n*(h2+4), w2*4]
    acc2 = jnp.zeros((n * h2, w2 * 4), jnp.float32)
    for kh in range(KSIZE):
        lhs = jnp.concatenate(
            [pg2[b * (h2 + 4) + kh: b * (h2 + 4) + kh + h2, :] for b in range(n)],
            axis=0)
        acc2 = acc2 + mm(lhs, b2_ref[kh])
    acc2 = jnp.maximum(acc2 + bias2_ref[...], 0.0)
    pooled2 = pool2x2(acc2, n * h2, w4 * 4)           # [n*h4, w4*4]

    # ---- ConvLSTM: gate conv on concat([x, h]) + fused peephole gate math ---
    h_prev = h_scr[...]
    c_prev = c_scr[...]
    xh = jnp.concatenate([pooled2, h_prev], axis=1)   # [n*h4, w4*(4+feat)]
    zpadg = jnp.zeros((PAD, w4 * (4 + feat)), jnp.float32)
    pgg = jnp.concatenate(
        sum([[zpadg, xh[b * h4:(b + 1) * h4, :], zpadg] for b in range(n)], []),
        axis=0)                                       # [n*(h4+4), w4*(4+feat)]
    accg = jnp.zeros((n * h4, 4 * feat * w4), jnp.float32)
    for kh in range(KSIZE):
        lhs = jnp.concatenate(
            [pgg[b * (h4 + 4) + kh: b * (h4 + 4) + kh + h4, :] for b in range(n)],
            axis=0)
        accg = accg + mm(lhs, bg_ref[kh])
    gates = accg + biasg_ref[...]

    fw = feat * w4
    g_i = gates[:, 0 * fw:1 * fw]
    g_f = gates[:, 1 * fw:2 * fw]
    g_c = gates[:, 2 * fw:3 * fw]
    g_o = gates[:, 3 * fw:4 * fw]

    i_t = jax.nn.sigmoid(g_i + wci_ref[...] * c_prev)
    f_t = jax.nn.sigmoid(g_f + wcf_ref[...] * c_prev)
    c_new = f_t * c_prev + i_t * jnp.tanh(g_c)
    o_t = jax.nn.sigmoid(g_o + wco_ref[...] * c_new)
    h_new = o_t * jnp.tanh(c_new)

    h_scr[...] = h_new
    c_scr[...] = c_new
    h_out_ref[...] = h_new
    c_out_ref[...] = c_new


# ---------------------------------------------------------------------------
# Wrapper: layout prep + banded weights (XLA glue) + the single pallas_call.
# ---------------------------------------------------------------------------
def encoder_obs_forward(obs, params):
    """obs: [T, N, C, H, W] (PyTorch layout) -> (h, c), each [N, 8, H//4, W//4]."""
    t_frames, n, cin, hh, ww = obs.shape
    feat = FEAT
    h2, w2 = hh // 2, ww // 2
    h4, w4 = hh // 4, ww // 4

    # frames: NCHW -> packed [T, N, H+2*PAD, W*C] (lane = w*C + c).  Only the
    # H padding is materialized here; W padding is folded into the banded
    # weight matrices.
    x = jnp.transpose(obs, (0, 1, 3, 4, 2)).astype(jnp.float32)
    x = jnp.pad(x, ((0, 0), (0, 0), (PAD, PAD), (0, 0), (0, 0)))
    x = x.reshape(t_frames, n, hh + 2 * PAD, ww * cin)

    # banded (block-Toeplitz) GEMM weights, bf16 for the MXU
    b1 = _banded_conv(params["w1"], ww, ww,
                      _pool_interleave_perm(ww, 4)).astype(jnp.bfloat16)
    b2 = _banded_conv(params["w2"], w2, w2,
                      _pool_interleave_perm(w2, 4)).astype(jnp.bfloat16)
    bg = _banded_lstm(params["w_lstm_x"], params["w_lstm_h"],
                      w4).astype(jnp.bfloat16)

    bias1 = jnp.tile(params["b1"], ww).reshape(1, ww * 4).astype(jnp.float32)
    bias2 = jnp.tile(params["b2"], w2).reshape(1, w2 * 4).astype(jnp.float32)
    biasg = jnp.broadcast_to(params["b_lstm"].reshape(4, 1, feat),
                             (4, w4, feat)).reshape(1, 4 * feat * w4)

    sel_e, sel_o = _row_pool_selectors(n * hh)

    wci = jnp.tile(params["w_ci"].reshape(h4, w4 * feat), (n, 1))
    wcf = jnp.tile(params["w_cf"].reshape(h4, w4 * feat), (n, 1))
    wco = jnp.tile(params["w_co"].reshape(h4, w4 * feat), (n, 1))

    def const_spec(arr):
        ndim = arr.ndim
        return pl.BlockSpec(arr.shape, lambda t: (0,) * ndim)

    kernel = functools.partial(_encoder_kernel, n=n, hh=hh, ww=ww,
                               cin=cin, feat=feat)
    out_sds = jax.ShapeDtypeStruct((n * h4, w4 * feat), jnp.float32)

    h_pk, c_pk = pl.pallas_call(
        kernel,
        grid=(t_frames,),
        in_specs=[
            pl.BlockSpec((1, n, hh + 2 * PAD, ww * cin),
                         lambda t: (t, 0, 0, 0)),
            const_spec(b1), const_spec(b2), const_spec(bg),
            const_spec(bias1), const_spec(bias2), const_spec(biasg),
            const_spec(sel_e), const_spec(sel_o),
            const_spec(wci), const_spec(wcf), const_spec(wco),
        ],
        out_specs=(pl.BlockSpec((n * h4, w4 * feat), lambda t: (0, 0)),
                   pl.BlockSpec((n * h4, w4 * feat), lambda t: (0, 0))),
        out_shape=(out_sds, out_sds),
        scratch_shapes=[pltpu.VMEM((n * h4, w4 * feat), jnp.float32),
                        pltpu.VMEM((n * h4, w4 * feat), jnp.float32)],
        compiler_params=pltpu.CompilerParams(
            dimension_semantics=("arbitrary",)),
    )(x, b1, b2, bg, bias1, bias2, biasg, sel_e, sel_o, wci, wcf, wco)

    h_out = h_pk.reshape(n, h4, w4, feat).transpose(0, 3, 1, 2)
    c_out = c_pk.reshape(n, h4, w4, feat).transpose(0, 3, 1, 2)
    return h_out, c_out


# ---------------------------------------------------------------------------
# Pure-JAX reference (f32) for the numerical sanity check in __main__.
# ---------------------------------------------------------------------------
def encoder_obs_reference(obs, params):
    t_frames, n, cin, hh, ww = obs.shape
    feat = FEAT
    h4, w4 = hh // 4, ww // 4
    dn = ("NHWC", "HWIO", "NHWC")

    def conv(xv, w):
        return jax.lax.conv_general_dilated(
            xv, w, (1, 1), [(PAD, PAD), (PAD, PAD)], dimension_numbers=dn)

    def pool(xv):
        b, h, w, c = xv.shape
        return xv.reshape(b, h // 2, 2, w // 2, 2, c).max(axis=(2, 4))

    x_all = jnp.transpose(obs, (0, 1, 3, 4, 2)).astype(jnp.float32)
    h = jnp.zeros((n, h4, w4, feat), jnp.float32)
    c = jnp.zeros((n, h4, w4, feat), jnp.float32)
    for t in range(t_frames):
        y = pool(jax.nn.relu(conv(x_all[t], params["w1"]) + params["b1"]))
        y = pool(jax.nn.relu(conv(y, params["w2"]) + params["b2"]))
        gates = (conv(y, params["w_lstm_x"]) + conv(h, params["w_lstm_h"])
                 + params["b_lstm"])
        g_i, g_f, g_c, g_o = jnp.split(gates, 4, axis=-1)
        i_t = jax.nn.sigmoid(g_i + params["w_ci"][None] * c)
        f_t = jax.nn.sigmoid(g_f + params["w_cf"][None] * c)
        c = f_t * c + i_t * jnp.tanh(g_c)
        o_t = jax.nn.sigmoid(g_o + params["w_co"][None] * c)
        h = o_t * jnp.tanh(c)
    return jnp.transpose(h, (0, 3, 1, 2)), jnp.transpose(c, (0, 3, 1, 2))


def init_params(key, channels, hh, ww):
    """Deterministic synthetic parameters (dense HWIO conv weights)."""
    feat = FEAT
    h4, w4 = hh // 4, ww // 4
    ks = jax.random.split(key, 10)

    def rnd(k, shape, scale):
        return scale * jax.random.normal(k, shape, jnp.float32)

    return {
        "w1": rnd(ks[0], (KSIZE, KSIZE, channels, 4), 0.10),
        "b1": rnd(ks[1], (4,), 0.01),
        "w2": rnd(ks[2], (KSIZE, KSIZE, 4, 4), 0.10),
        "b2": rnd(ks[3], (4,), 0.01),
        # ConvLSTM gate convs on x (4 ch) and h (8 ch); 4*F outputs = (i,f,c,o)
        "w_lstm_x": rnd(ks[4], (KSIZE, KSIZE, 4, 4 * feat), 0.05),
        "w_lstm_h": rnd(ks[5], (KSIZE, KSIZE, feat, 4 * feat), 0.05),
        "b_lstm": rnd(ks[6], (4 * feat,), 0.01),
        # per-location peephole weights (spatial size = GridRowColNum // 2 // 2)
        "w_ci": rnd(ks[7], (h4, w4, feat), 0.05),
        "w_cf": rnd(ks[8], (h4, w4, feat), 0.05),
        "w_co": rnd(ks[9], (h4, w4, feat), 0.05),
    }


if __name__ == "__main__":
    # tra_frames=3, batch=2, channels=4, GridRowColNum=16 (=> ConvLSTM on 4x4)
    T, N, C, H, W = 3, 2, 4, 16, 16

    key = jax.random.PRNGKey(0)
    k_obs, k_par = jax.random.split(key)
    obs = jax.random.normal(k_obs, (T, N, C, H, W), jnp.float32)
    params = init_params(k_par, C, H, W)

    obs_h, obs_c = jax.jit(encoder_obs_forward)(obs, params)
    obs_h = jax.block_until_ready(obs_h)
    obs_c = jax.block_until_ready(obs_c)

    assert obs_h.shape == (N, FEAT, H // 4, W // 4), obs_h.shape
    assert obs_c.shape == (N, FEAT, H // 4, W // 4), obs_c.shape
    assert bool(jnp.isfinite(obs_h).all()) and bool(jnp.isfinite(obs_c).all())

    # Numerical sanity check vs. an f32 pure-JAX reference; the kernel uses
    # bf16 MXU operands, so allow a loose tolerance.
    ref_h, ref_c = jax.jit(encoder_obs_reference)(obs, params)
    np.testing.assert_allclose(np.asarray(obs_h), np.asarray(ref_h),
                               atol=7.5e-2, rtol=7.5e-2)
    np.testing.assert_allclose(np.asarray(obs_c), np.asarray(ref_c),
                               atol=7.5e-2, rtol=7.5e-2)

    print("KERNEL_OK")
</pallas_src>

<mosaic_0001>
module attributes {stable_mosaic.version = 11 : i64} {
  func.func @_encoder_kernel(%arg0: i32, %arg1: memref<1x2x20x64xf32, #tpu.memory_space<vmem>>, %arg2: memref<5x64x64xbf16, #tpu.memory_space<vmem>>, %arg3: memref<5x32x32xbf16, #tpu.memory_space<vmem>>, %arg4: memref<5x48x128xbf16, #tpu.memory_space<vmem>>, %arg5: memref<1x64xf32, #tpu.memory_space<vmem>>, %arg6: memref<1x32xf32, #tpu.memory_space<vmem>>, %arg7: memref<1x128xf32, #tpu.memory_space<vmem>>, %arg8: memref<16x32xbf16, #tpu.memory_space<vmem>>, %arg9: memref<16x32xbf16, #tpu.memory_space<vmem>>, %arg10: memref<8x32xf32, #tpu.memory_space<vmem>>, %arg11: memref<8x32xf32, #tpu.memory_space<vmem>>, %arg12: memref<8x32xf32, #tpu.memory_space<vmem>>, %arg13: memref<8x32xf32, #tpu.memory_space<vmem>>, %arg14: memref<8x32xf32, #tpu.memory_space<vmem>>, %arg15: memref<8x32xf32, #tpu.memory_space<vmem>>, %arg16: memref<8x32xf32, #tpu.memory_space<vmem>>) attributes {dimension_semantics = [#tpu.dimension_semantics<arbitrary>], iteration_bounds = array<i64: 3>, scalar_prefetch = 0 : i64, scratch_operands = 2 : i64, tpu.core_type = #tpu.core_type<tc>, window_params = [{transform_indices = @transform_0, window_bounds = array<i64: 1, 2, 20, 64>}, {pipeline_mode = #tpu.pipeline_mode<synchronous>, transform_indices = @transform_1, window_bounds = array<i64: 5, 64, 64>}, {pipeline_mode = #tpu.pipeline_mode<synchronous>, transform_indices = @transform_2, window_bounds = array<i64: 5, 32, 32>}, {pipeline_mode = #tpu.pipeline_mode<synchronous>, transform_indices = @transform_3, window_bounds = array<i64: 5, 48, 128>}, {pipeline_mode = #tpu.pipeline_mode<synchronous>, transform_indices = @transform_4, window_bounds = array<i64: 1, 64>}, {pipeline_mode = #tpu.pipeline_mode<synchronous>, transform_indices = @transform_5, window_bounds = array<i64: 1, 32>}, {pipeline_mode = #tpu.pipeline_mode<synchronous>, transform_indices = @transform_6, window_bounds = array<i64: 1, 128>}, {pipeline_mode = #tpu.pipeline_mode<synchronous>, transform_indices = @transform_7, window_bounds = array<i64: 16, 32>}, {pipeline_mode = #tpu.pipeline_mode<synchronous>, transform_indices = @transform_8, window_bounds = array<i64: 16, 32>}, {pipeline_mode = #tpu.pipeline_mode<synchronous>, transform_indices = @transform_9, window_bounds = array<i64: 8, 32>}, {pipeline_mode = #tpu.pipeline_mode<synchronous>, transform_indices = @transform_10, window_bounds = array<i64: 8, 32>}, {pipeline_mode = #tpu.pipeline_mode<synchronous>, transform_indices = @transform_11, window_bounds = array<i64: 8, 32>}, {pipeline_mode = #tpu.pipeline_mode<synchronous>, transform_indices = @transform_12, window_bounds = array<i64: 8, 32>}, {pipeline_mode = #tpu.pipeline_mode<synchronous>, transform_indices = @transform_13, window_bounds = array<i64: 8, 32>}]} {
    %c0_i32 = arith.constant 0 : i32
    %0 = arith.cmpi eq, %arg0, %c0_i32 : i32
    %1 = arith.extui %0 : i1 to i32
    %c0_i32_0 = arith.constant 0 : i32
    %2 = arith.cmpi ne, %1, %c0_i32_0 : i32
    scf.if %2 {
      %cst_101 = arith.constant 0.000000e+00 : f32
      %205 = vector.broadcast %cst_101 : f32 to vector<8x32xf32>
      %c0_102 = arith.constant 0 : index
      %c0_103 = arith.constant 0 : index
      %206 = vector.load %arg15[%c0_102, %c0_103] : memref<8x32xf32, #tpu.memory_space<vmem>>, vector<8x32xf32>
      tpu.vector_store %arg15[%c0_102, %c0_103], %205 {strides = array<i32>} : memref<8x32xf32, #tpu.memory_space<vmem>>, vector<8x32xf32>,
      %cst_104 = arith.constant 0.000000e+00 : f32
      %207 = vector.broadcast %cst_104 : f32 to vector<8x32xf32>
      %c0_105 = arith.constant 0 : index
      %c0_106 = arith.constant 0 : index
      %208 = vector.load %arg16[%c0_105, %c0_106] : memref<8x32xf32, #tpu.memory_space<vmem>>, vector<8x32xf32>
      tpu.vector_store %arg16[%c0_105, %c0_106], %207 {strides = array<i32>} : memref<8x32xf32, #tpu.memory_space<vmem>>, vector<8x32xf32>,
    } else {
    }
    %c0 = arith.constant 0 : index
    %c0_1 = arith.constant 0 : index
    %3 = vector.load %arg8[%c0, %c0_1] : memref<16x32xbf16, #tpu.memory_space<vmem>>, vector<16x32xbf16>
    %c0_2 = arith.constant 0 : index
    %c0_3 = arith.constant 0 : index
    %4 = vector.load %arg9[%c0_2, %c0_3] : memref<16x32xbf16, #tpu.memory_space<vmem>>, vector<16x32xbf16>
    %c0_4 = arith.constant 0 : index
    %c0_5 = arith.constant 0 : index
    %c0_6 = arith.constant 0 : index
    %c0_7 = arith.constant 0 : index
    %5 = vector.load %arg1[%c0_4, %c0_5, %c0_6, %c0_7] : memref<1x2x20x64xf32, #tpu.memory_space<vmem>>, vector<1x2x20x64xf32>
    %6 = vector.shape_cast %5 : vector<1x2x20x64xf32> to vector<2x20x64xf32>
    %cst = arith.constant 0.000000e+00 : f32
    %7 = vector.broadcast %cst : f32 to vector<32x64xf32>
    %8 = vector.extract_strided_slice %6 {offsets = [0, 0, 0], sizes = [2, 16, 64], strides = [1, 1, 1]} : vector<2x20x64xf32> to vector<2x16x64xf32>
    %9 = vector.shape_cast %8 : vector<2x16x64xf32> to vector<32x64xf32>
    %c0_8 = arith.constant 0 : index
    %c0_9 = arith.constant 0 : index
    %c0_10 = arith.constant 0 : index
    %10 = vector.load %arg2[%c0_8, %c0_9, %c0_10] : memref<5x64x64xbf16, #tpu.memory_space<vmem>>, vector<1x64x64xbf16>
    %11 = vector.shape_cast %10 : vector<1x64x64xbf16> to vector<64x64xbf16>
    %12 = arith.truncf %9 : vector<32x64xf32> to vector<32x64xbf16>
    %cst_11 = arith.constant dense<0.000000e+00> : vector<32x64xf32>
    %13 = tpu.matmul %12, %11, %cst_11 {dimension_numbers = #tpu.dot_dimension_numbers<[1], [0], [0], [1], [0, 0, 1, 1], [], []>} : vector<32x64xbf16>, vector<64x64xbf16>, vector<32x64xf32> -> vector<32x64xf32>
    %14 = arith.addf %7, %13 : vector<32x64xf32>
    %15 = vector.extract_strided_slice %6 {offsets = [0, 1, 0], sizes = [2, 16, 64], strides = [1, 1, 1]} : vector<2x20x64xf32> to vector<2x16x64xf32>
    %16 = vector.shape_cast %15 : vector<2x16x64xf32> to vector<32x64xf32>
    %c1 = arith.constant 1 : index
    %c0_12 = arith.constant 0 : index
    %c0_13 = arith.constant 0 : index
    %17 = vector.load %arg2[%c1, %c0_12, %c0_13] : memref<5x64x64xbf16, #tpu.memory_space<vmem>>, vector<1x64x64xbf16>
    %18 = vector.shape_cast %17 : vector<1x64x64xbf16> to vector<64x64xbf16>
    %19 = arith.truncf %16 : vector<32x64xf32> to vector<32x64xbf16>
    %cst_14 = arith.constant dense<0.000000e+00> : vector<32x64xf32>
    %20 = tpu.matmul %19, %18, %cst_14 {dimension_numbers = #tpu.dot_dimension_numbers<[1], [0], [0], [1], [0, 0, 1, 1], [], []>} : vector<32x64xbf16>, vector<64x64xbf16>, vector<32x64xf32> -> vector<32x64xf32>
    %21 = arith.addf %14, %20 : vector<32x64xf32>
    %22 = vector.extract_strided_slice %6 {offsets = [0, 2, 0], sizes = [2, 16, 64], strides = [1, 1, 1]} : vector<2x20x64xf32> to vector<2x16x64xf32>
    %23 = vector.shape_cast %22 : vector<2x16x64xf32> to vector<32x64xf32>
    %c2 = arith.constant 2 : index
    %c0_15 = arith.constant 0 : index
    %c0_16 = arith.constant 0 : index
    %24 = vector.load %arg2[%c2, %c0_15, %c0_16] : memref<5x64x64xbf16, #tpu.memory_space<vmem>>, vector<1x64x64xbf16>
    %25 = vector.shape_cast %24 : vector<1x64x64xbf16> to vector<64x64xbf16>
    %26 = arith.truncf %23 : vector<32x64xf32> to vector<32x64xbf16>
    %cst_17 = arith.constant dense<0.000000e+00> : vector<32x64xf32>
    %27 = tpu.matmul %26, %25, %cst_17 {dimension_numbers = #tpu.dot_dimension_numbers<[1], [0], [0], [1], [0, 0, 1, 1], [], []>} : vector<32x64xbf16>, vector<64x64xbf16>, vector<32x64xf32> -> vector<32x64xf32>
    %28 = arith.addf %21, %27 : vector<32x64xf32>
    %29 = vector.extract_strided_slice %6 {offsets = [0, 3, 0], sizes = [2, 16, 64], strides = [1, 1, 1]} : vector<2x20x64xf32> to vector<2x16x64xf32>
    %30 = vector.shape_cast %29 : vector<2x16x64xf32> to vector<32x64xf32>
    %c3 = arith.constant 3 : index
    %c0_18 = arith.constant 0 : index
    %c0_19 = arith.constant 0 : index
    %31 = vector.load %arg2[%c3, %c0_18, %c0_19] : memref<5x64x64xbf16, #tpu.memory_space<vmem>>, vector<1x64x64xbf16>
    %32 = vector.shape_cast %31 : vector<1x64x64xbf16> to vector<64x64xbf16>
    %33 = arith.truncf %30 : vector<32x64xf32> to vector<32x64xbf16>
    %cst_20 = arith.constant dense<0.000000e+00> : vector<32x64xf32>
    %34 = tpu.matmul %33, %32, %cst_20 {dimension_numbers = #tpu.dot_dimension_numbers<[1], [0], [0], [1], [0, 0, 1, 1], [], []>} : vector<32x64xbf16>, vector<64x64xbf16>, vector<32x64xf32> -> vector<32x64xf32>
    %35 = arith.addf %28, %34 : vector<32x64xf32>
    %36 = vector.extract_strided_slice %6 {offsets = [0, 4, 0], sizes = [2, 16, 64], strides = [1, 1, 1]} : vector<2x20x64xf32> to vector<2x16x64xf32>
    %37 = vector.shape_cast %36 : vector<2x16x64xf32> to vector<32x64xf32>
    %c4 = arith.constant 4 : index
    %c0_21 = arith.constant 0 : index
    %c0_22 = arith.constant 0 : index
    %38 = vector.load %arg2[%c4, %c0_21, %c0_22] : memref<5x64x64xbf16, #tpu.memory_space<vmem>>, vector<1x64x64xbf16>
    %39 = vector.shape_cast %38 : vector<1x64x64xbf16> to vector<64x64xbf16>
    %40 = arith.truncf %37 : vector<32x64xf32> to vector<32x64xbf16>
    %cst_23 = arith.constant dense<0.000000e+00> : vector<32x64xf32>
    %41 = tpu.matmul %40, %39, %cst_23 {dimension_numbers = #tpu.dot_dimension_numbers<[1], [0], [0], [1], [0, 0, 1, 1], [], []>} : vector<32x64xbf16>, vector<64x64xbf16>, vector<32x64xf32> -> vector<32x64xf32>
    %42 = arith.addf %35, %41 : vector<32x64xf32>
    %c0_24 = arith.constant 0 : index
    %c0_25 = arith.constant 0 : index
    %43 = vector.load %arg5[%c0_24, %c0_25] : memref<1x64xf32, #tpu.memory_space<vmem>>, vector<1x64xf32>
    %44 = vector.broadcast %43 : vector<1x64xf32> to vector<32x64xf32>
    %45 = arith.addf %42, %44 : vector<32x64xf32>
    %cst_26 = arith.constant 0.000000e+00 : f32
    %46 = vector.broadcast %cst_26 : f32 to vector<32x64xf32>
    %47 = arith.maximumf %45, %46 : vector<32x64xf32>
    %48 = vector.extract_strided_slice %47 {offsets = [0, 0], sizes = [32, 32], strides = [1, 1]} : vector<32x64xf32> to vector<32x32xf32>
    %49 = vector.extract_strided_slice %47 {offsets = [0, 32], sizes = [32, 32], strides = [1, 1]} : vector<32x64xf32> to vector<32x32xf32>
    %50 = arith.maximumf %48, %49 : vector<32x32xf32>
    %51 = arith.truncf %50 : vector<32x32xf32> to vector<32x32xbf16>
    %cst_27 = arith.constant dense<0.000000e+00> : vector<16x32xf32>
    %52 = tpu.matmul %3, %51, %cst_27 {dimension_numbers = #tpu.dot_dimension_numbers<[1], [0], [0], [1], [0, 0, 1, 1], [], []>} : vector<16x32xbf16>, vector<32x32xbf16>, vector<16x32xf32> -> vector<16x32xf32>
    %53 = arith.truncf %50 : vector<32x32xf32> to vector<32x32xbf16>
    %cst_28 = arith.constant dense<0.000000e+00> : vector<16x32xf32>
    %54 = tpu.matmul %4, %53, %cst_28 {dimension_numbers = #tpu.dot_dimension_numbers<[1], [0], [0], [1], [0, 0, 1, 1], [], []>} : vector<16x32xbf16>, vector<32x32xbf16>, vector<16x32xf32> -> vector<16x32xf32>
    %55 = arith.maximumf %52, %54 : vector<16x32xf32>
    %cst_29 = arith.constant 0.000000e+00 : f32
    %56 = vector.broadcast %cst_29 : f32 to vector<2x32xf32>
    %57 = vector.extract_strided_slice %55 {offsets = [0, 0], sizes = [8, 32], strides = [1, 1]} : vector<16x32xf32> to vector<8x32xf32>
    %58 = vector.extract_strided_slice %55 {offsets = [8, 0], sizes = [8, 32], strides = [1, 1]} : vector<16x32xf32> to vector<8x32xf32>
    %59 = tpu.concatenate %56, %57, %56, %56, %58, %56 in 0 : vector<2x32xf32>, vector<8x32xf32>, vector<2x32xf32>, vector<2x32xf32>, vector<8x32xf32>, vector<2x32xf32> -> vector<24x32xf32>
    %cst_30 = arith.constant 0.000000e+00 : f32
    %60 = vector.broadcast %cst_30 : f32 to vector<16x32xf32>
    %61 = vector.extract_strided_slice %59 {offsets = [0, 0], sizes = [8, 32], strides = [1, 1]} : vector<24x32xf32> to vector<8x32xf32>
    %62 = vector.extract_strided_slice %59 {offsets = [12, 0], sizes = [8, 32], strides = [1, 1]} : vector<24x32xf32> to vector<8x32xf32>
    %63 = tpu.concatenate %61, %62 in 0 : vector<8x32xf32>, vector<8x32xf32> -> vector<16x32xf32>
    %c0_31 = arith.constant 0 : index
    %c0_32 = arith.constant 0 : index
    %c0_33 = arith.constant 0 : index
    %64 = vector.load %arg3[%c0_31, %c0_32, %c0_33] : memref<5x32x32xbf16, #tpu.memory_space<vmem>>, vector<1x32x32xbf16>
    %65 = vector.shape_cast %64 : vector<1x32x32xbf16> to vector<32x32xbf16>
    %66 = arith.truncf %63 : vector<16x32xf32> to vector<16x32xbf16>
    %cst_34 = arith.constant dense<0.000000e+00> : vector<16x32xf32>
    %67 = tpu.matmul %66, %65, %cst_34 {dimension_numbers = #tpu.dot_dimension_numbers<[1], [0], [0], [1], [0, 0, 1, 1], [], []>} : vector<16x32xbf16>, vector<32x32xbf16>, vector<16x32xf32> -> vector<16x32xf32>
    %68 = arith.addf %60, %67 : vector<16x32xf32>
    %69 = vector.extract_strided_slice %59 {offsets = [1, 0], sizes = [8, 32], strides = [1, 1]} : vector<24x32xf32> to vector<8x32xf32>
    %70 = vector.extract_strided_slice %59 {offsets = [13, 0], sizes = [8, 32], strides = [1, 1]} : vector<24x32xf32> to vector<8x32xf32>
    %71 = tpu.concatenate %69, %70 in 0 : vector<8x32xf32>, vector<8x32xf32> -> vector<16x32xf32>
    %c1_35 = arith.constant 1 : index
    %c0_36 = arith.constant 0 : index
    %c0_37 = arith.constant 0 : index
    %72 = vector.load %arg3[%c1_35, %c0_36, %c0_37] : memref<5x32x32xbf16, #tpu.memory_space<vmem>>, vector<1x32x32xbf16>
    %73 = vector.shape_cast %72 : vector<1x32x32xbf16> to vector<32x32xbf16>
    %74 = arith.truncf %71 : vector<16x32xf32> to vector<16x32xbf16>
    %cst_38 = arith.constant dense<0.000000e+00> : vector<16x32xf32>
    %75 = tpu.matmul %74, %73, %cst_38 {dimension_numbers = #tpu.dot_dimension_numbers<[1], [0], [0], [1], [0, 0, 1, 1], [], []>} : vector<16x32xbf16>, vector<32x32xbf16>, vector<16x32xf32> -> vector<16x32xf32>
    %76 = arith.addf %68, %75 : vector<16x32xf32>
    %77 = vector.extract_strided_slice %59 {offsets = [2, 0], sizes = [8, 32], strides = [1, 1]} : vector<24x32xf32> to vector<8x32xf32>
    %78 = vector.extract_strided_slice %59 {offsets = [14, 0], sizes = [8, 32], strides = [1, 1]} : vector<24x32xf32> to vector<8x32xf32>
    %79 = tpu.concatenate %77, %78 in 0 : vector<8x32xf32>, vector<8x32xf32> -> vector<16x32xf32>
    %c2_39 = arith.constant 2 : index
    %c0_40 = arith.constant 0 : index
    %c0_41 = arith.constant 0 : index
    %80 = vector.load %arg3[%c2_39, %c0_40, %c0_41] : memref<5x32x32xbf16, #tpu.memory_space<vmem>>, vector<1x32x32xbf16>
    %81 = vector.shape_cast %80 : vector<1x32x32xbf16> to vector<32x32xbf16>
    %82 = arith.truncf %79 : vector<16x32xf32> to vector<16x32xbf16>
    %cst_42 = arith.constant dense<0.000000e+00> : vector<16x32xf32>
    %83 = tpu.matmul %82, %81, %cst_42 {dimension_numbers = #tpu.dot_dimension_numbers<[1], [0], [0], [1], [0, 0, 1, 1], [], []>} : vector<16x32xbf16>, vector<32x32xbf16>, vector<16x32xf32> -> vector<16x32xf32>
    %84 = arith.addf %76, %83 : vector<16x32xf32>
    %85 = vector.extract_strided_slice %59 {offsets = [3, 0], sizes = [8, 32], strides = [1, 1]} : vector<24x32xf32> to vector<8x32xf32>
    %86 = vector.extract_strided_slice %59 {offsets = [15, 0], sizes = [8, 32], strides = [1, 1]} : vector<24x32xf32> to vector<8x32xf32>
    %87 = tpu.concatenate %85, %86 in 0 : vector<8x32xf32>, vector<8x32xf32> -> vector<16x32xf32>
    %c3_43 = arith.constant 3 : index
    %c0_44 = arith.constant 0 : index
    %c0_45 = arith.constant 0 : index
    %88 = vector.load %arg3[%c3_43, %c0_44, %c0_45] : memref<5x32x32xbf16, #tpu.memory_space<vmem>>, vector<1x32x32xbf16>
    %89 = vector.shape_cast %88 : vector<1x32x32xbf16> to vector<32x32xbf16>
    %90 = arith.truncf %87 : vector<16x32xf32> to vector<16x32xbf16>
    %cst_46 = arith.constant dense<0.000000e+00> : vector<16x32xf32>
    %91 = tpu.matmul %90, %89, %cst_46 {dimension_numbers = #tpu.dot_dimension_numbers<[1], [0], [0], [1], [0, 0, 1, 1], [], []>} : vector<16x32xbf16>, vector<32x32xbf16>, vector<16x32xf32> -> vector<16x32xf32>
    %92 = arith.addf %84, %91 : vector<16x32xf32>
    %93 = vector.extract_strided_slice %59 {offsets = [4, 0], sizes = [8, 32], strides = [1, 1]} : vector<24x32xf32> to vector<8x32xf32>
    %94 = vector.extract_strided_slice %59 {offsets = [16, 0], sizes = [8, 32], strides = [1, 1]} : vector<24x32xf32> to vector<8x32xf32>
    %95 = tpu.concatenate %93, %94 in 0 : vector<8x32xf32>, vector<8x32xf32> -> vector<16x32xf32>
    %c4_47 = arith.constant 4 : index
    %c0_48 = arith.constant 0 : index
    %c0_49 = arith.constant 0 : index
    %96 = vector.load %arg3[%c4_47, %c0_48, %c0_49] : memref<5x32x32xbf16, #tpu.memory_space<vmem>>, vector<1x32x32xbf16>
    %97 = vector.shape_cast %96 : vector<1x32x32xbf16> to vector<32x32xbf16>
    %98 = arith.truncf %95 : vector<16x32xf32> to vector<16x32xbf16>
    %cst_50 = arith.constant dense<0.000000e+00> : vector<16x32xf32>
    %99 = tpu.matmul %98, %97, %cst_50 {dimension_numbers = #tpu.dot_dimension_numbers<[1], [0], [0], [1], [0, 0, 1, 1], [], []>} : vector<16x32xbf16>, vector<32x32xbf16>, vector<16x32xf32> -> vector<16x32xf32>
    %100 = arith.addf %92, %99 : vector<16x32xf32>
    %c0_51 = arith.constant 0 : index
    %c0_52 = arith.constant 0 : index
    %101 = vector.load %arg6[%c0_51, %c0_52] : memref<1x32xf32, #tpu.memory_space<vmem>>, vector<1x32xf32>
    %102 = vector.broadcast %101 : vector<1x32xf32> to vector<16x32xf32>
    %103 = arith.addf %100, %102 : vector<16x32xf32>
    %cst_53 = arith.constant 0.000000e+00 : f32
    %104 = vector.broadcast %cst_53 : f32 to vector<16x32xf32>
    %105 = arith.maximumf %103, %104 : vector<16x32xf32>
    %106 = vector.extract_strided_slice %105 {offsets = [0, 0], sizes = [16, 16], strides = [1, 1]} : vector<16x32xf32> to vector<16x16xf32>
    %107 = vector.extract_strided_slice %105 {offsets = [0, 16], sizes = [16, 16], strides = [1, 1]} : vector<16x32xf32> to vector<16x16xf32>
    %108 = arith.maximumf %106, %107 : vector<16x16xf32>
    %109 = vector.extract_strided_slice %3 {offsets = [0, 0], sizes = [8, 16], strides = [1, 1]} : vector<16x32xbf16> to vector<8x16xbf16>
    %110 = vector.extract_strided_slice %4 {offsets = [0, 0], sizes = [8, 16], strides = [1, 1]} : vector<16x32xbf16> to vector<8x16xbf16>
    %111 = arith.truncf %108 : vector<16x16xf32> to vector<16x16xbf16>
    %cst_54 = arith.constant dense<0.000000e+00> : vector<8x16xf32>
    %112 = tpu.matmul %109, %111, %cst_54 {dimension_numbers = #tpu.dot_dimension_numbers<[1], [0], [0], [1], [0, 0, 1, 1], [], []>} : vector<8x16xbf16>, vector<16x16xbf16>, vector<8x16xf32> -> vector<8x16xf32>
    %113 = arith.truncf %108 : vector<16x16xf32> to vector<16x16xbf16>
    %cst_55 = arith.constant dense<0.000000e+00> : vector<8x16xf32>
    %114 = tpu.matmul %110, %113, %cst_55 {dimension_numbers = #tpu.dot_dimension_numbers<[1], [0], [0], [1], [0, 0, 1, 1], [], []>} : vector<8x16xbf16>, vector<16x16xbf16>, vector<8x16xf32> -> vector<8x16xf32>
    %115 = arith.maximumf %112, %114 : vector<8x16xf32>
    %c0_56 = arith.constant 0 : index
    %c0_57 = arith.constant 0 : index
    %116 = vector.load %arg15[%c0_56, %c0_57] : memref<8x32xf32, #tpu.memory_space<vmem>>, vector<8x32xf32>
    %c0_58 = arith.constant 0 : index
    %c0_59 = arith.constant 0 : index
    %117 = vector.load %arg16[%c0_58, %c0_59] : memref<8x32xf32, #tpu.memory_space<vmem>>, vector<8x32xf32>
    %118 = tpu.concatenate %115, %116 in 1 : vector<8x16xf32>, vector<8x32xf32> -> vector<8x48xf32>
    %cst_60 = arith.constant 0.000000e+00 : f32
    %119 = vector.broadcast %cst_60 : f32 to vector<2x48xf32>
    %120 = vector.extract_strided_slice %118 {offsets = [0, 0], sizes = [4, 48], strides = [1, 1]} : vector<8x48xf32> to vector<4x48xf32>
    %121 = vector.extract_strided_slice %118 {offsets = [4, 0], sizes = [4, 48], strides = [1, 1]} : vector<8x48xf32> to vector<4x48xf32>
    %122 = tpu.concatenate %119, %120, %119, %119, %121, %119 in 0 : vector<2x48xf32>, vector<4x48xf32>, vector<2x48xf32>, vector<2x48xf32>, vector<4x48xf32>, vector<2x48xf32> -> vector<16x48xf32>
    %cst_61 = arith.constant 0.000000e+00 : f32
    %123 = vector.broadcast %cst_61 : f32 to vector<8x128xf32>
    %124 = vector.extract_strided_slice %122 {offsets = [0, 0], sizes = [4, 48], strides = [1, 1]} : vector<16x48xf32> to vector<4x48xf32>
    %125 = vector.extract_strided_slice %122 {offsets = [8, 0], sizes = [4, 48], strides = [1, 1]} : vector<16x48xf32> to vector<4x48xf32>
    %126 = tpu.concatenate %124, %125 in 0 : vector<4x48xf32>, vector<4x48xf32> -> vector<8x48xf32>
    %c0_62 = arith.constant 0 : index
    %c0_63 = arith.constant 0 : index
    %c0_64 = arith.constant 0 : index
    %127 = vector.load %arg4[%c0_62, %c0_63, %c0_64] : memref<5x48x128xbf16, #tpu.memory_space<vmem>>, vector<1x48x128xbf16>
    %128 = vector.shape_cast %127 : vector<1x48x128xbf16> to vector<48x128xbf16>
    %129 = arith.truncf %126 : vector<8x48xf32> to vector<8x48xbf16>
    %cst_65 = arith.constant dense<0.000000e+00> : vector<8x128xf32>
    %130 = tpu.matmul %129, %128, %cst_65 {dimension_numbers = #tpu.dot_dimension_numbers<[1], [0], [0], [1], [0, 0, 1, 1], [], []>} : vector<8x48xbf16>, vector<48x128xbf16>, vector<8x128xf32> -> vector<8x128xf32>
    %131 = arith.addf %123, %130 : vector<8x128xf32>
    %132 = vector.extract_strided_slice %122 {offsets = [1, 0], sizes = [4, 48], strides = [1, 1]} : vector<16x48xf32> to vector<4x48xf32>
    %133 = vector.extract_strided_slice %122 {offsets = [9, 0], sizes = [4, 48], strides = [1, 1]} : vector<16x48xf32> to vector<4x48xf32>
    %134 = tpu.concatenate %132, %133 in 0 : vector<4x48xf32>, vector<4x48xf32> -> vector<8x48xf32>
    %c1_66 = arith.constant 1 : index
    %c0_67 = arith.constant 0 : index
    %c0_68 = arith.constant 0 : index
    %135 = vector.load %arg4[%c1_66, %c0_67, %c0_68] : memref<5x48x128xbf16, #tpu.memory_space<vmem>>, vector<1x48x128xbf16>
    %136 = vector.shape_cast %135 : vector<1x48x128xbf16> to vector<48x128xbf16>
    %137 = arith.truncf %134 : vector<8x48xf32> to vector<8x48xbf16>
    %cst_69 = arith.constant dense<0.000000e+00> : vector<8x128xf32>
    %138 = tpu.matmul %137, %136, %cst_69 {dimension_numbers = #tpu.dot_dimension_numbers<[1], [0], [0], [1], [0, 0, 1, 1], [], []>} : vector<8x48xbf16>, vector<48x128xbf16>, vector<8x128xf32> -> vector<8x128xf32>
    %139 = arith.addf %131, %138 : vector<8x128xf32>
    %140 = vector.extract_strided_slice %122 {offsets = [2, 0], sizes = [4, 48], strides = [1, 1]} : vector<16x48xf32> to vector<4x48xf32>
    %141 = vector.extract_strided_slice %122 {offsets = [10, 0], sizes = [4, 48], strides = [1, 1]} : vector<16x48xf32> to vector<4x48xf32>
    %142 = tpu.concatenate %140, %141 in 0 : vector<4x48xf32>, vector<4x48xf32> -> vector<8x48xf32>
    %c2_70 = arith.constant 2 : index
    %c0_71 = arith.constant 0 : index
    %c0_72 = arith.constant 0 : index
    %143 = vector.load %arg4[%c2_70, %c0_71, %c0_72] : memref<5x48x128xbf16, #tpu.memory_space<vmem>>, vector<1x48x128xbf16>
    %144 = vector.shape_cast %143 : vector<1x48x128xbf16> to vector<48x128xbf16>
    %145 = arith.truncf %142 : vector<8x48xf32> to vector<8x48xbf16>
    %cst_73 = arith.constant dense<0.000000e+00> : vector<8x128xf32>
    %146 = tpu.matmul %145, %144, %cst_73 {dimension_numbers = #tpu.dot_dimension_numbers<[1], [0], [0], [1], [0, 0, 1, 1], [], []>} : vector<8x48xbf16>, vector<48x128xbf16>, vector<8x128xf32> -> vector<8x128xf32>
    %147 = arith.addf %139, %146 : vector<8x128xf32>
    %148 = vector.extract_strided_slice %122 {offsets = [3, 0], sizes = [4, 48], strides = [1, 1]} : vector<16x48xf32> to vector<4x48xf32>
    %149 = vector.extract_strided_slice %122 {offsets = [11, 0], sizes = [4, 48], strides = [1, 1]} : vector<16x48xf32> to vector<4x48xf32>
    %150 = tpu.concatenate %148, %149 in 0 : vector<4x48xf32>, vector<4x48xf32> -> vector<8x48xf32>
    %c3_74 = arith.constant 3 : index
    %c0_75 = arith.constant 0 : index
    %c0_76 = arith.constant 0 : index
    %151 = vector.load %arg4[%c3_74, %c0_75, %c0_76] : memref<5x48x128xbf16, #tpu.memory_space<vmem>>, vector<1x48x128xbf16>
    %152 = vector.shape_cast %151 : vector<1x48x128xbf16> to vector<48x128xbf16>
    %153 = arith.truncf %150 : vector<8x48xf32> to vector<8x48xbf16>
    %cst_77 = arith.constant dense<0.000000e+00> : vector<8x128xf32>
    %154 = tpu.matmul %153, %152, %cst_77 {dimension_numbers = #tpu.dot_dimension_numbers<[1], [0], [0], [1], [0, 0, 1, 1], [], []>} : vector<8x48xbf16>, vector<48x128xbf16>, vector<8x128xf32> -> vector<8x128xf32>
    %155 = arith.addf %147, %154 : vector<8x128xf32>
    %156 = vector.extract_strided_slice %122 {offsets = [4, 0], sizes = [4, 48], strides = [1, 1]} : vector<16x48xf32> to vector<4x48xf32>
    %157 = vector.extract_strided_slice %122 {offsets = [12, 0], sizes = [4, 48], strides = [1, 1]} : vector<16x48xf32> to vector<4x48xf32>
    %158 = tpu.concatenate %156, %157 in 0 : vector<4x48xf32>, vector<4x48xf32> -> vector<8x48xf32>
    %c4_78 = arith.constant 4 : index
    %c0_79 = arith.constant 0 : index
    %c0_80 = arith.constant 0 : index
    %159 = vector.load %arg4[%c4_78, %c0_79, %c0_80] : memref<5x48x128xbf16, #tpu.memory_space<vmem>>, vector<1x48x128xbf16>
    %160 = vector.shape_cast %159 : vector<1x48x128xbf16> to vector<48x128xbf16>
    %161 = arith.truncf %158 : vector<8x48xf32> to vector<8x48xbf16>
    %cst_81 = arith.constant dense<0.000000e+00> : vector<8x128xf32>
    %162 = tpu.matmul %161, %160, %cst_81 {dimension_numbers = #tpu.dot_dimension_numbers<[1], [0], [0], [1], [0, 0, 1, 1], [], []>} : vector<8x48xbf16>, vector<48x128xbf16>, vector<8x128xf32> -> vector<8x128xf32>
    %163 = arith.addf %155, %162 : vector<8x128xf32>
    %c0_82 = arith.constant 0 : index
    %c0_83 = arith.constant 0 : index
    %164 = vector.load %arg7[%c0_82, %c0_83] : memref<1x128xf32, #tpu.memory_space<vmem>>, vector<1x128xf32>
    %165 = vector.broadcast %164 : vector<1x128xf32> to vector<8x128xf32>
    %166 = arith.addf %163, %165 : vector<8x128xf32>
    %167 = vector.extract_strided_slice %166 {offsets = [0, 0], sizes = [8, 32], strides = [1, 1]} : vector<8x128xf32> to vector<8x32xf32>
    %168 = vector.extract_strided_slice %166 {offsets = [0, 32], sizes = [8, 32], strides = [1, 1]} : vector<8x128xf32> to vector<8x32xf32>
    %169 = vector.extract_strided_slice %166 {offsets = [0, 64], sizes = [8, 32], strides = [1, 1]} : vector<8x128xf32> to vector<8x32xf32>
    %170 = vector.extract_strided_slice %166 {offsets = [0, 96], sizes = [8, 32], strides = [1, 1]} : vector<8x128xf32> to vector<8x32xf32>
    %c0_84 = arith.constant 0 : index
    %c0_85 = arith.constant 0 : index
    %171 = vector.load %arg10[%c0_84, %c0_85] : memref<8x32xf32, #tpu.memory_space<vmem>>, vector<8x32xf32>
    %172 = arith.mulf %171, %117 : vector<8x32xf32>
    %173 = arith.addf %167, %172 : vector<8x32xf32>
    %174 = arith.negf %173 : vector<8x32xf32>
    %175 = math.exp %174 : vector<8x32xf32>
    %cst_86 = arith.constant 1.000000e+00 : f32
    %176 = vector.broadcast %cst_86 : f32 to vector<8x32xf32>
    %177 = arith.addf %176, %175 : vector<8x32xf32>
    %178 = arith.divf %176, %177 : vector<8x32xf32>
    %c0_87 = arith.constant 0 : index
    %c0_88 = arith.constant 0 : index
    %179 = vector.load %arg11[%c0_87, %c0_88] : memref<8x32xf32, #tpu.memory_space<vmem>>, vector<8x32xf32>
    %180 = arith.mulf %179, %117 : vector<8x32xf32>
    %181 = arith.addf %168, %180 : vector<8x32xf32>
    %182 = arith.negf %181 : vector<8x32xf32>
    %183 = math.exp %182 : vector<8x32xf32>
    %cst_89 = arith.constant 1.000000e+00 : f32
    %184 = vector.broadcast %cst_89 : f32 to vector<8x32xf32>
    %185 = arith.addf %184, %183 : vector<8x32xf32>
    %186 = arith.divf %184, %185 : vector<8x32xf32>
    %187 = arith.mulf %186, %117 : vector<8x32xf32>
    %188 = math.tanh %169 : vector<8x32xf32>
    %189 = arith.mulf %178, %188 : vector<8x32xf32>
    %190 = arith.addf %187, %189 : vector<8x32xf32>
    %c0_90 = arith.constant 0 : index
    %c0_91 = arith.constant 0 : index
    %191 = vector.load %arg12[%c0_90, %c0_91] : memref<8x32xf32, #tpu.memory_space<vmem>>, vector<8x32xf32>
    %192 = arith.mulf %191, %190 : vector<8x32xf32>
    %193 = arith.addf %170, %192 : vector<8x32xf32>
    %194 = arith.negf %193 : vector<8x32xf32>
    %195 = math.exp %194 : vector<8x32xf32>
    %cst_92 = arith.constant 1.000000e+00 : f32
    %196 = vector.broadcast %cst_92 : f32 to vector<8x32xf32>
    %197 = arith.addf %196, %195 : vector<8x32xf32>
    %198 = arith.divf %196, %197 : vector<8x32xf32>
    %199 = math.tanh %190 : vector<8x32xf32>
    %200 = arith.mulf %198, %199 : vector<8x32xf32>
    %c0_93 = arith.constant 0 : index
    %c0_94 = arith.constant 0 : index
    %201 = vector.load %arg15[%c0_93, %c0_94] : memref<8x32xf32, #tpu.memory_space<vmem>>, vector<8x32xf32>
    tpu.vector_store %arg15[%c0_93, %c0_94], %200 {strides = array<i32>} : memref<8x32xf32, #tpu.memory_space<vmem>>, vector<8x32xf32>,
    %c0_95 = arith.constant 0 : index
    %c0_96 = arith.constant 0 : index
    %202 = vector.load %arg16[%c0_95, %c0_96] : memref<8x32xf32, #tpu.memory_space<vmem>>, vector<8x32xf32>
    tpu.vector_store %arg16[%c0_95, %c0_96], %190 {strides = array<i32>} : memref<8x32xf32, #tpu.memory_space<vmem>>, vector<8x32xf32>,
    %c0_97 = arith.constant 0 : index
    %c0_98 = arith.constant 0 : index
    %203 = vector.load %arg13[%c0_97, %c0_98] : memref<8x32xf32, #tpu.memory_space<vmem>>, vector<8x32xf32>
    tpu.vector_store %arg13[%c0_97, %c0_98], %200 {strides = array<i32>} : memref<8x32xf32, #tpu.memory_space<vmem>>, vector<8x32xf32>,
    %c0_99 = arith.constant 0 : index
    %c0_100 = arith.constant 0 : index
    %204 = vector.load %arg14[%c0_99, %c0_100] : memref<8x32xf32, #tpu.memory_space<vmem>>, vector<8x32xf32>
    tpu.vector_store %arg14[%c0_99, %c0_100], %190 {strides = array<i32>} : memref<8x32xf32, #tpu.memory_space<vmem>>, vector<8x32xf32>,
    return
  }
  func.func @transform_0(%arg0: i32) -> (i32, i32, i32, i32) {
    %c0_i32 = arith.constant 0 : i32
    %c0_i32_0 = arith.constant 0 : i32
    %c0_i32_1 = arith.constant 0 : i32
    %c0_i32_2 = arith.constant 0 : i32
    return %arg0, %c0_i32, %c0_i32_0, %c0_i32_1 : i32, i32, i32, i32
  }
  func.func @transform_1(%arg0: i32) -> (i32, i32, i32) {
    %c0_i32 = arith.constant 0 : i32
    %c0_i32_0 = arith.constant 0 : i32
    %c0_i32_1 = arith.constant 0 : i32
    %c0_i32_2 = arith.constant 0 : i32
    return %c0_i32, %c0_i32_0, %c0_i32_1 : i32, i32, i32
  }
  func.func @transform_2(%arg0: i32) -> (i32, i32, i32) {
    %c0_i32 = arith.constant 0 : i32
    %c0_i32_0 = arith.constant 0 : i32
    %c0_i32_1 = arith.constant 0 : i32
    %c0_i32_2 = arith.constant 0 : i32
    return %c0_i32, %c0_i32_0, %c0_i32_1 : i32, i32, i32
  }
  func.func @transform_3(%arg0: i32) -> (i32, i32, i32) {
    %c0_i32 = arith.constant 0 : i32
    %c0_i32_0 = arith.constant 0 : i32
    %c0_i32_1 = arith.constant 0 : i32
    %c0_i32_2 = arith.constant 0 : i32
    return %c0_i32, %c0_i32_0, %c0_i32_1 : i32, i32, i32
  }
  func.func @transform_4(%arg0: i32) -> (i32, i32) {
    %c0_i32 = arith.constant 0 : i32
    %c0_i32_0 = arith.constant 0 : i32
    %c0_i32_1 = arith.constant 0 : i32
    return %c0_i32, %c0_i32_0 : i32, i32
  }
  func.func @transform_5(%arg0: i32) -> (i32, i32) {
    %c0_i32 = arith.constant 0 : i32
    %c0_i32_0 = arith.constant 0 : i32
    %c0_i32_1 = arith.constant 0 : i32
    return %c0_i32, %c0_i32_0 : i32, i32
  }
  func.func @transform_6(%arg0: i32) -> (i32, i32) {
    %c0_i32 = arith.constant 0 : i32
    %c0_i32_0 = arith.constant 0 : i32
    %c0_i32_1 = arith.constant 0 : i32
    return %c0_i32, %c0_i32_0 : i32, i32
  }
  func.func @transform_7(%arg0: i32) -> (i32, i32) {
    %c0_i32 = arith.constant 0 : i32
    %c0_i32_0 = arith.constant 0 : i32
    %c0_i32_1 = arith.constant 0 : i32
    return %c0_i32, %c0_i32_0 : i32, i32
  }
  func.func @transform_8(%arg0: i32) -> (i32, i32) {
    %c0_i32 = arith.constant 0 : i32
    %c0_i32_0 = arith.constant 0 : i32
    %c0_i32_1 = arith.constant 0 : i32
    return %c0_i32, %c0_i32_0 : i32, i32
  }
  func.func @transform_9(%arg0: i32) -> (i32, i32) {
    %c0_i32 = arith.constant 0 : i32
    %c0_i32_0 = arith.constant 0 : i32
    %c0_i32_1 = arith.constant 0 : i32
    return %c0_i32, %c0_i32_0 : i32, i32
  }
  func.func @transform_10(%arg0: i32) -> (i32, i32) {
    %c0_i32 = arith.constant 0 : i32
    %c0_i32_0 = arith.constant 0 : i32
    %c0_i32_1 = arith.constant 0 : i32
    return %c0_i32, %c0_i32_0 : i32, i32
  }
  func.func @transform_11(%arg0: i32) -> (i32, i32) {
    %c0_i32 = arith.constant 0 : i32
    %c0_i32_0 = arith.constant 0 : i32
    %c0_i32_1 = arith.constant 0 : i32
    return %c0_i32, %c0_i32_0 : i32, i32
  }
  func.func @transform_12(%arg0: i32) -> (i32, i32) {
    %c0_i32 = arith.constant 0 : i32
    %c0_i32_0 = arith.constant 0 : i32
    %c0_i32_1 = arith.constant 0 : i32
    return %c0_i32, %c0_i32_0 : i32, i32
  }
  func.func @transform_13(%arg0: i32) -> (i32, i32) {
    %c0_i32 = arith.constant 0 : i32
    %c0_i32_0 = arith.constant 0 : i32
    %c0_i32_1 = arith.constant 0 : i32
    return %c0_i32, %c0_i32_0 : i32, i32
  }
}

</mosaic_0001>

<llo_original>
// kernel: tile.25
$region0: #{tile.25}
  #allocation0 [shape = 's32[1]{0}', space=sflag, size = 0x4, scoped, tag = 'scoped memory for tile.25']
  %s0 = inlined_call_operand.vmem [shape: f32[4], index: 0, kind: input, shape index: {}]
  %s1 = inlined_call_operand.vmem [shape: f32[16,4], index: 1, kind: output, shape index: {}]
  // Predicated region
  $region2: #{tile.25} parent=0 // pred_check
    _
  $region3: #{tile.25} parent=0 // pred_check_branch
    %3 = sbr.rel (0) target = $region5
  $region4: #{tile.25} parent=0 // pred_region
    _
  $region5: #{tile.25} parent=0 // pred_fallthru
    _
  %v4 = vld [vmem:[%s0] ss:$0 sm:$0xff]
  %5 = vst [vmem:[%s1] sm:$0xff] %v4
  %s6 = scalar_lea.vmem %s1, 8
  %7 = vst [vmem:[%s6] sm:$0xff] %v4

// kernel: tile.26
$region0: #{tile.26}
  %s0 = inlined_call_operand.vmem [shape: f32[16,4], index: 0, kind: input, shape index: {}]
  %s1 = inlined_call_operand.vmem [shape: f32[1,64], index: 1, kind: output, shape index: {}]
  $region1: #{tile.26} parent=0
    #allocation0 [shape = 'u8[4096]{0}', space=vmem, size = 0x1000, scoped, tag = 'scoped mem for output reshape']
    %v2 = vld [vmem:[%s0] sm:$0x1]
    %vm3 = vcmask 31744
    %4 = vst.msk [vmem:[#allocation0] sm:$0x1] %vm3, %v2
    %s5 = scalar_lea.vmem %s0, 15
    %v6 = vld [vmem:[%s5] sm:$0x1]
    %7 = vrot.lane.b32.xlu0 %v6, 60
    %v8 = vpop.permute.xlu0 %7
    %vm9 = vcmask 523744
    %10 = vst.msk [vmem:[#allocation0] sm:$0x1] %vm9, %v8
    %s11 = scalar_lea.vmem %s0, 14
    %v12 = vld [vmem:[%s11] sm:$0x1]
    %13 = vrot.lane.b32.xlu0 %v12, 56
    %v14 = vpop.permute.xlu0 %13
    %vm15 = vcmask 490944
    %16 = vst.msk [vmem:[#allocation0] sm:$0x1] %vm15, %v14
    %s17 = scalar_lea.vmem %s0, 13
    %v18 = vld [vmem:[%s17] sm:$0x1]
    %19 = vrot.lane.b32.xlu0 %v18, 52
    %v20 = vpop.permute.xlu0 %19
    %vm21 = vcmask 458144
    %22 = vst.msk [vmem:[#allocation0] sm:$0x1] %vm21, %v20
    %s23 = scalar_lea.vmem %s0, 12
    %v24 = vld [vmem:[%s23] sm:$0x1]
    %25 = vrot.lane.b32.xlu0 %v24, 48
    %v26 = vpop.permute.xlu0 %25
    %vm27 = vcmask 425344
    %28 = vst.msk [vmem:[#allocation0] sm:$0x1] %vm27, %v26
    %s29 = scalar_lea.vmem %s0, 11
    %v30 = vld [vmem:[%s29] sm:$0x1]
    %31 = vrot.lane.b32.xlu0 %v30, 44
    %v32 = vpop.permute.xlu0 %31
    %vm33 = vcmask 392544
    %34 = vst.msk [vmem:[#allocation0] sm:$0x1] %vm33, %v32
    %s35 = scalar_lea.vmem %s0, 10
    %v36 = vld [vmem:[%s35] sm:$0x1]
    %37 = vrot.lane.b32.xlu0 %v36, 40
    %v38 = vpop.permute.xlu0 %37
    %vm39 = vcmask 359744
    %40 = vst.msk [vmem:[#allocation0] sm:$0x1] %vm39, %v38
    %s41 = scalar_lea.vmem %s0, 9
    %v42 = vld [vmem:[%s41] sm:$0x1]
    %43 = vrot.lane.b32.xlu0 %v42, 36
    %v44 = vpop.permute.xlu0 %43
    %vm45 = vcmask 326944
    %46 = vst.msk [vmem:[#allocation0] sm:$0x1] %vm45, %v44
    %s47 = scalar_lea.vmem %s0, 8
    %v48 = vld [vmem:[%s47] sm:$0x1]
    %49 = vrot.lane.b32.xlu0 %v48, 32
    %v50 = vpop.permute.xlu0 %49
    %vm51 = vcmask 294144
    %52 = vst.msk [vmem:[#allocation0] sm:$0x1] %vm51, %v50
    %s53 = scalar_lea.vmem %s0, 7
    %v54 = vld [vmem:[%s53] sm:$0x1]
    %55 = vrot.lane.b32.xlu0 %v54, 28
    %v56 = vpop.permute.xlu0 %55
    %vm57 = vcmask 261344
    %58 = vst.msk [vmem:[#allocation0] sm:$0x1] %vm57, %v56
    %s59 = scalar_lea.vmem %s0, 6
    %v60 = vld [vmem:[%s59] sm:$0x1]
    %61 = vrot.lane.b32.xlu0 %v60, 24
    %v62 = vpop.permute.xlu0 %61
    %vm63 = vcmask 228544
    %64 = vst.msk [vmem:[#allocation0] sm:$0x1] %vm63, %v62
    %s65 = scalar_lea.vmem %s0, 5
    %v66 = vld [vmem:[%s65] sm:$0x1]
    %67 = vrot.lane.b32.xlu0 %v66, 20
    %v68 = vpop.permute.xlu0 %67
    %vm69 = vcmask 195744
    %70 = vst.msk [vmem:[#allocation0] sm:$0x1] %vm69, %v68
    %s71 = scalar_lea.vmem %s0, 4
    %v72 = vld [vmem:[%s71] sm:$0x1]
    %73 = vrot.lane.b32.xlu0 %v72, 16
    %v74 = vpop.permute.xlu0 %73
    %vm75 = vcmask 162944
    %76 = vst.msk [vmem:[#allocation0] sm:$0x1] %vm75, %v74
    %s77 = scalar_lea.vmem %s0, 3
    %v78 = vld [vmem:[%s77] sm:$0x1]
    %79 = vrot.lane.b32.xlu0 %v78, 12
    %v80 = vpop.permute.xlu0 %79
    %vm81 = vcmask 130144
    %82 = vst.msk [vmem:[#allocation0] sm:$0x1] %vm81, %v80
    %s83 = scalar_lea.vmem %s0, 2
    %v84 = vld [vmem:[%s83] sm:$0x1]
    %85 = vrot.lane.b32.xlu0 %v84, 8
    %v86 = vpop.permute.xlu0 %85
    %vm87 = vcmask 97344
    %88 = vst.msk [vmem:[#allocation0] sm:$0x1] %vm87, %v86
    %s89 = scalar_lea.vmem %s0, 1
    %v90 = vld [vmem:[%s89] sm:$0x1]
    %91 = vrot.lane.b32.xlu0 %v90, 4
    %v92 = vpop.permute.xlu0 %91
    %vm93 = vcmask 64544
    %94 = vst.msk [vmem:[#allocation0] sm:$0x1] %vm93, %v92
    %s96 = sshllo.u32 0, 1
    %v98 = vld [vmem:[#allocation0] sm:%s96]
    %s99 = sshllo.u32 0, 1
    %100 = vst [vmem:[%s1] sm:%s99] %v98

// kernel: tile.30
$region0: #{tile.30}
  #allocation0 [shape = 's32[1]{0}', space=sflag, size = 0x4, scoped, tag = 'scoped memory for tile.30']
  %s0 = inlined_call_operand.vmem [shape: f32[4], index: 0, kind: input, shape index: {}]
  %s1 = inlined_call_operand.vmem [shape: f32[8,4], index: 1, kind: output, shape index: {}]
  // Predicated region
  $region2: #{tile.30} parent=0 // pred_check
    _
  $region3: #{tile.30} parent=0 // pred_check_branch
    %3 = sbr.rel (0) target = $region5
  $region4: #{tile.30} parent=0 // pred_region
    _
  $region5: #{tile.30} parent=0 // pred_fallthru
    _
  %v4 = vld [vmem:[%s0] ss:$0 sm:$0xff]
  %5 = vst [vmem:[%s1] sm:$0xff] %v4

// kernel: tile.31
$region0: #{tile.31}
  %s0 = inlined_call_operand.vmem [shape: f32[8,4], index: 0, kind: input, shape index: {}]
  %s1 = inlined_call_operand.vmem [shape: f32[1,32], index: 1, kind: output, shape index: {}]
  $region1: #{tile.31} parent=0
    #allocation0 [shape = 'u8[4096]{0}', space=vmem, size = 0x1000, scoped, tag = 'scoped mem for output reshape']
    %v2 = vld [vmem:[%s0] sm:$0x1]
    %vm3 = vcmask 31744
    %4 = vst.msk [vmem:[#allocation0] sm:$0x1] %vm3, %v2
    %s5 = scalar_lea.vmem %s0, 7
    %v6 = vld [vmem:[%s5] sm:$0x1]
    %7 = vrot.lane.b32.xlu0 %v6, 28
    %v8 = vpop.permute.xlu0 %7
    %vm9 = vcmask 261344
    %10 = vst.msk [vmem:[#allocation0] sm:$0x1] %vm9, %v8
    %s11 = scalar_lea.vmem %s0, 6
    %v12 = vld [vmem:[%s11] sm:$0x1]
    %13 = vrot.lane.b32.xlu0 %v12, 24
    %v14 = vpop.permute.xlu0 %13
    %vm15 = vcmask 228544
    %16 = vst.msk [vmem:[#allocation0] sm:$0x1] %vm15, %v14
    %s17 = scalar_lea.vmem %s0, 5
    %v18 = vld [vmem:[%s17] sm:$0x1]
    %19 = vrot.lane.b32.xlu0 %v18, 20
    %v20 = vpop.permute.xlu0 %19
    %vm21 = vcmask 195744
    %22 = vst.msk [vmem:[#allocation0] sm:$0x1] %vm21, %v20
    %s23 = scalar_lea.vmem %s0, 4
    %v24 = vld [vmem:[%s23] sm:$0x1]
    %25 = vrot.lane.b32.xlu0 %v24, 16
    %v26 = vpop.permute.xlu0 %25
    %vm27 = vcmask 162944
    %28 = vst.msk [vmem:[#allocation0] sm:$0x1] %vm27, %v26
    %s29 = scalar_lea.vmem %s0, 3
    %v30 = vld [vmem:[%s29] sm:$0x1]
    %31 = vrot.lane.b32.xlu0 %v30, 12
    %v32 = vpop.permute.xlu0 %31
    %vm33 = vcmask 130144
    %34 = vst.msk [vmem:[#allocation0] sm:$0x1] %vm33, %v32
    %s35 = scalar_lea.vmem %s0, 2
    %v36 = vld [vmem:[%s35] sm:$0x1]
    %37 = vrot.lane.b32.xlu0 %v36, 8
    %v38 = vpop.permute.xlu0 %37
    %vm39 = vcmask 97344
    %40 = vst.msk [vmem:[#allocation0] sm:$0x1] %vm39, %v38
    %s41 = scalar_lea.vmem %s0, 1
    %v42 = vld [vmem:[%s41] sm:$0x1]
    %43 = vrot.lane.b32.xlu0 %v42, 4
    %v44 = vpop.permute.xlu0 %43
    %vm45 = vcmask 64544
    %46 = vst.msk [vmem:[#allocation0] sm:$0x1] %vm45, %v44
    %s48 = sshllo.u32 0, 1
    %v50 = vld [vmem:[#allocation0] sm:%s48]
    %s51 = sshllo.u32 0, 1
    %52 = vst [vmem:[%s1] sm:%s51] %v50

// kernel: encoder_obs_forward.1
$region0: #{encoder_obs_forward.1}
  #allocation0 [shape = 'u32[]', space=smem, size = 0x4, offset = 0x4, fixed_abs, tag = 'smem constant byte address 0x4 - core index']
  #allocation1 [shape = 'u32[144,128]{1,0:T(1,128)}', space=vmem, size = 0x12000, scoped, tag = 'internal scratch']
  #allocation2 [shape = 'f32[8,32]{1,0:T(8,128)}', space=vmem, size = 0x1000, scoped, tag = 'scratch operand']
  #allocation3 [shape = 'f32[8,32]{1,0:T(8,128)}', space=vmem, size = 0x1000, scoped, tag = 'scratch operand']
  %s0 = inlined_call_operand.vmem [shape: f32[3,2,20,64], index: 0, kind: input, shape index: {}]
  %s1 = inlined_call_operand.vmem [shape: bf16[5,64,64], index: 1, kind: input, shape index: {}]
  %s2 = inlined_call_operand.vmem [shape: bf16[5,32,32], index: 2, kind: input, shape index: {}]
  %s3 = inlined_call_operand.vmem [shape: bf16[5,48,128], index: 3, kind: input, shape index: {}]
  %s4 = inlined_call_operand.vmem [shape: f32[1,64], index: 4, kind: input, shape index: {}]
  %s5 = inlined_call_operand.vmem [shape: f32[1,32], index: 5, kind: input, shape index: {}]
  %s6 = inlined_call_operand.vmem [shape: f32[1,128], index: 6, kind: input, shape index: {}]
  %s7 = inlined_call_operand.vmem [shape: bf16[16,32], index: 7, kind: input, shape index: {}]
  %s8 = inlined_call_operand.vmem [shape: bf16[16,32], index: 8, kind: input, shape index: {}]
  %s9 = inlined_call_operand.vmem [shape: f32[8,32], index: 9, kind: input, shape index: {}]
  %s10 = inlined_call_operand.vmem [shape: f32[8,32], index: 10, kind: input, shape index: {}]
  %s11 = inlined_call_operand.vmem [shape: f32[8,32], index: 11, kind: input, shape index: {}]
  %s12 = inlined_call_operand.vmem [shape: f32[8,32], index: 12, kind: output, shape index: {0}]
  %s13 = inlined_call_operand.vmem [shape: f32[8,32], index: 13, kind: output, shape index: {1}]
  %14 = xla_tuple %s12, %s13
  %s15 = sld [smem:[#allocation0]]
  $region93: #{encoder_obs_forward.1} parent=0
    _
  %s17 = ssub.s32 1, %s15
  %s18 = scalar_select 0, %s17, %s15
  loop: start=0, step=1, limit=5
  $region2: #{encoder_obs_forward.1} parent=0 // loop_pre_header
    _
  $region3: #{encoder_obs_forward.1} parent=0 // loop_header
    %s20 = sphi 0, %s24
    %p21 = scmp.ge.s32.totalorder %s20, 5
    %s30 = sphi 0, %s32
    %s33 = sphi 0, %s30
    %s34 = sphi 0, %s33
    %s50 = sphi 0, %s34
    %s54 = sphi 0, %s54
    %s56 = sphi 0, %s54
    %s57 = sphi 0, %s56
    %s71 = sphi 0, %s57
    %s75 = sphi 0, %s75
    %s77 = sphi 0, %s75
    %s78 = sphi 0, %s77
    %s92 = sphi 0, %s78
    %s96 = sphi 0, %s96
    %s98 = sphi 0, %s96
    %s99 = sphi 0, %s98
    %s113 = sphi 0, %s99
    %s117 = sphi 0, %s117
    %s119 = sphi 0, %s117
    %s120 = sphi 0, %s119
    %s134 = sphi 0, %s120
    %s138 = sphi 0, %s138
    %s140 = sphi 0, %s138
    %s141 = sphi 0, %s140
    %s155 = sphi 0, %s141
    %s159 = sphi 0, %s159
    %s161 = sphi 0, %s159
    %s162 = sphi 0, %s161
    %s176 = sphi 0, %s162
    %s180 = sphi 0, %s180
    %s182 = sphi 0, %s180
    %s183 = sphi 0, %s182
    %s197 = sphi 0, %s183
    %s201 = sphi 0, %s201
    %s203 = sphi 0, %s201
    %s204 = sphi 0, %s203
    %s218 = sphi 0, %s204
    %s222 = sphi 0, %s222
    %s224 = sphi 0, %s222
    %s225 = sphi 0, %s224
    %s239 = sphi 0, %s225
    %s243 = sphi 0, %s243
    %s245 = sphi 0, %s243
    %s246 = sphi 0, %s245
    %s260 = sphi 0, %s246
    %s264 = sphi 0, %s264
    %s266 = sphi 0, %s264
    %s267 = sphi 0, %s266
    %s281 = sphi 0, %s267
    %s285 = sphi 0, %s285
    %s287 = sphi 0, %s285
    %s288 = sphi 0, %s287
    %s302 = sphi 0, %s288
    %s306 = sphi 0, %s306
    %s308 = sphi 0, %s306
    %s309 = sphi 0, %s308
    %s323 = sphi 0, %s309
  $region4: #{encoder_obs_forward.1} parent=0 // loop_header_branch
    %23 = sbr.rel (%p21) target = $region8
  $region5: #{encoder_obs_forward.1} parent=0 // loop_body
    %s25 = ssub.s32 %s20, 1
    %s26 = ssub.s32 %s20, 2
    %s27 = sadd.s32 %s20, 1
    %s28 = ssub.s32 %s20, %s27
    %p29 = scmp.eq.s32.totalorder %s28, 0
    %s31 = sadd.s32 %s30, 1
    %s32 = scalar_select %p29, %s30, %s31
    %p35 = pneg %p29
    %p36 = scmp.eq.s32.totalorder %s20, 2
    %p37 = por %p35, %p36
    %p38 = scmp.ne.s32.totalorder %s30, %s33
    %p39 = scmp.eq.s32.totalorder %s20, 0
    %p40 = por %p38, %p39
    %p41 = scmp.ne.s32.totalorder %s30, %s33
    %p42 = scmp.eq.s32.totalorder %s25, 2
    %p43 = por %p41, %p42
    %p44 = scmp.ne.s32.totalorder %s33, %s34
    %p45 = scmp.eq.s32.totalorder %s25, 0
    %p46 = por %p44, %p45
    %p47 = scmp.ne.s32.totalorder %s33, %s34
    %p48 = scmp.eq.s32.totalorder %s26, 2
    %p49 = por %p47, %p48
    %p51 = scmp.ne.s32.totalorder %s34, %s50
    %p52 = scmp.eq.s32.totalorder %s26, 0
    %p53 = por %p51, %p52
    %s55 = sadd.s32 %s54, 1
    %p58 = scmp.eq.s32.totalorder %s20, 2
    %p59 = scmp.ne.s32.totalorder %s54, %s56
    %p60 = scmp.eq.s32.totalorder %s20, 0
    %p61 = por %p59, %p60
    %p62 = scmp.ne.s32.totalorder %s54, %s56
    %p63 = scmp.eq.s32.totalorder %s25, 2
    %p64 = por %p62, %p63
    %p65 = scmp.ne.s32.totalorder %s56, %s57
    %p66 = scmp.eq.s32.totalorder %s25, 0
    %p67 = por %p65, %p66
    %p68 = scmp.ne.s32.totalorder %s56, %s57
    %p69 = scmp.eq.s32.totalorder %s26, 2
    %p70 = por %p68, %p69
    %p72 = scmp.ne.s32.totalorder %s57, %s71
    %p73 = scmp.eq.s32.totalorder %s26, 0
    %p74 = por %p72, %p73
    %s76 = sadd.s32 %s75, 1
    %p79 = scmp.eq.s32.totalorder %s20, 2
    %p80 = scmp.ne.s32.totalorder %s75, %s77
    %p81 = scmp.eq.s32.totalorder %s20, 0
    %p82 = por %p80, %p81
    %p83 = scmp.ne.s32.totalorder %s75, %s77
    %p84 = scmp.eq.s32.totalorder %s25, 2
    %p85 = por %p83, %p84
    %p86 = scmp.ne.s32.totalorder %s77, %s78
    %p87 = scmp.eq.s32.totalorder %s25, 0
    %p88 = por %p86, %p87
    %p89 = scmp.ne.s32.totalorder %s77, %s78
    %p90 = scmp.eq.s32.totalorder %s26, 2
    %p91 = por %p89, %p90
    %p93 = scmp.ne.s32.totalorder %s78, %s92
    %p94 = scmp.eq.s32.totalorder %s26, 0
    %p95 = por %p93, %p94
    %s97 = sadd.s32 %s96, 1
    %p100 = scmp.eq.s32.totalorder %s20, 2
    %p101 = scmp.ne.s32.totalorder %s96, %s98
    %p102 = scmp.eq.s32.totalorder %s20, 0
    %p103 = por %p101, %p102
    %p104 = scmp.ne.s32.totalorder %s96, %s98
    %p105 = scmp.eq.s32.totalorder %s25, 2
    %p106 = por %p104, %p105
    %p107 = scmp.ne.s32.totalorder %s98, %s99
    %p108 = scmp.eq.s32.totalorder %s25, 0
    %p109 = por %p107, %p108
    %p110 = scmp.ne.s32.totalorder %s98, %s99
    %p111 = scmp.eq.s32.totalorder %s26, 2
    %p112 = por %p110, %p111
    %p114 = scmp.ne.s32.totalorder %s99, %s113
    %p115 = scmp.eq.s32.totalorder %s26, 0
    %p116 = por %p114, %p115
    %s118 = sadd.s32 %s117, 1
    %p121 = scmp.eq.s32.totalorder %s20, 2
    %p122 = scmp.ne.s32.totalorder %s117, %s119
    %p123 = scmp.eq.s32.totalorder %s20, 0
    %p124 = por %p122, %p123
    %p125 = scmp.ne.s32.totalorder %s117, %s119
    %p126 = scmp.eq.s32.totalorder %s25, 2
    %p127 = por %p125, %p126
    %p128 = scmp.ne.s32.totalorder %s119, %s120
    %p129 = scmp.eq.s32.totalorder %s25, 0
    %p130 = por %p128, %p129
    %p131 = scmp.ne.s32.totalorder %s119, %s120
    %p132 = scmp.eq.s32.totalorder %s26, 2
    %p133 = por %p131, %p132
    %p135 = scmp.ne.s32.totalorder %s120, %s134
    %p136 = scmp.eq.s32.totalorder %s26, 0
    %p137 = por %p135, %p136
    %s139 = sadd.s32 %s138, 1
    %p142 = scmp.eq.s32.totalorder %s20, 2
    %p143 = scmp.ne.s32.totalorder %s138, %s140
    %p144 = scmp.eq.s32.totalorder %s20, 0
    %p145 = por %p143, %p144
    %p146 = scmp.ne.s32.totalorder %s138, %s140
    %p147 = scmp.eq.s32.totalorder %s25, 2
    %p148 = por %p146, %p147
    %p149 = scmp.ne.s32.totalorder %s140, %s141
    %p150 = scmp.eq.s32.totalorder %s25, 0
    %p151 = por %p149, %p150
    %p152 = scmp.ne.s32.totalorder %s140, %s141
    %p153 = scmp.eq.s32.totalorder %s26, 2
    %p154 = por %p152, %p153
    %p156 = scmp.ne.s32.totalorder %s141, %s155
    %p157 = scmp.eq.s32.totalorder %s26, 0
    %p158 = por %p156, %p157
    %s160 = sadd.s32 %s159, 1
    %p163 = scmp.eq.s32.totalorder %s20, 2
    %p164 = scmp.ne.s32.totalorder %s159, %s161
    %p165 = scmp.eq.s32.totalorder %s20, 0
    %p166 = por %p164, %p165
    %p167 = scmp.ne.s32.totalorder %s159, %s161
    %p168 = scmp.eq.s32.totalorder %s25, 2
    %p169 = por %p167, %p168
    %p170 = scmp.ne.s32.totalorder %s161, %s162
    %p171 = scmp.eq.s32.totalorder %s25, 0
    %p172 = por %p170, %p171
    %p173 = scmp.ne.s32.totalorder %s161, %s162
    %p174 = scmp.eq.s32.totalorder %s26, 2
    %p175 = por %p173, %p174
    %p177 = scmp.ne.s32.totalorder %s162, %s176
    %p178 = scmp.eq.s32.totalorder %s26, 0
    %p179 = por %p177, %p178
    %s181 = sadd.s32 %s180, 1
    %p184 = scmp.eq.s32.totalorder %s20, 2
    %p185 = scmp.ne.s32.totalorder %s180, %s182
    %p186 = scmp.eq.s32.totalorder %s20, 0
    %p187 = por %p185, %p186
    %p188 = scmp.ne.s32.totalorder %s180, %s182
    %p189 = scmp.eq.s32.totalorder %s25, 2
    %p190 = por %p188, %p189
    %p191 = scmp.ne.s32.totalorder %s182, %s183
    %p192 = scmp.eq.s32.totalorder %s25, 0
    %p193 = por %p191, %p192
    %p194 = scmp.ne.s32.totalorder %s182, %s183
    %p195 = scmp.eq.s32.totalorder %s26, 2
    %p196 = por %p194, %p195
    %p198 = scmp.ne.s32.totalorder %s183, %s197
    %p199 = scmp.eq.s32.totalorder %s26, 0
    %p200 = por %p198, %p199
    %s202 = sadd.s32 %s201, 1
    %p205 = scmp.eq.s32.totalorder %s20, 2
    %p206 = scmp.ne.s32.totalorder %s201, %s203
    %p207 = scmp.eq.s32.totalorder %s20, 0
    %p208 = por %p206, %p207
    %p209 = scmp.ne.s32.totalorder %s201, %s203
    %p210 = scmp.eq.s32.totalorder %s25, 2
    %p211 = por %p209, %p210
    %p212 = scmp.ne.s32.totalorder %s203, %s204
    %p213 = scmp.eq.s32.totalorder %s25, 0
    %p214 = por %p212, %p213
    %p215 = scmp.ne.s32.totalorder %s203, %s204
    %p216 = scmp.eq.s32.totalorder %s26, 2
    %p217 = por %p215, %p216
    %p219 = scmp.ne.s32.totalorder %s204, %s218
    %p220 = scmp.eq.s32.totalorder %s26, 0
    %p221 = por %p219, %p220
    %s223 = sadd.s32 %s222, 1
    %p226 = scmp.eq.s32.totalorder %s20, 2
    %p227 = scmp.ne.s32.totalorder %s222, %s224
    %p228 = scmp.eq.s32.totalorder %s20, 0
    %p229 = por %p227, %p228
    %p230 = scmp.ne.s32.totalorder %s222, %s224
    %p231 = scmp.eq.s32.totalorder %s25, 2
    %p232 = por %p230, %p231
    %p233 = scmp.ne.s32.totalorder %s224, %s225
    %p234 = scmp.eq.s32.totalorder %s25, 0
    %p235 = por %p233, %p234
    %p236 = scmp.ne.s32.totalorder %s224, %s225
    %p237 = scmp.eq.s32.totalorder %s26, 2
    %p238 = por %p236, %p237
    %p240 = scmp.ne.s32.totalorder %s225, %s239
    %p241 = scmp.eq.s32.totalorder %s26, 0
    %p242 = por %p240, %p241
    %s244 = sadd.s32 %s243, 1
    %p247 = scmp.eq.s32.totalorder %s20, 2
    %p248 = scmp.ne.s32.totalorder %s243, %s245
    %p249 = scmp.eq.s32.totalorder %s20, 0
    %p250 = por %p248, %p249
    %p251 = scmp.ne.s32.totalorder %s243, %s245
    %p252 = scmp.eq.s32.totalorder %s25, 2
    %p253 = por %p251, %p252
    %p254 = scmp.ne.s32.totalorder %s245, %s246
    %p255 = scmp.eq.s32.totalorder %s25, 0
    %p256 = por %p254, %p255
    %p257 = scmp.ne.s32.totalorder %s245, %s246
    %p258 = scmp.eq.s32.totalorder %s26, 2
    %p259 = por %p257, %p258
    %p261 = scmp.ne.s32.totalorder %s246, %s260
    %p262 = scmp.eq.s32.totalorder %s26, 0
    %p263 = por %p261, %p262
    %s265 = sadd.s32 %s264, 1
    %p268 = scmp.eq.s32.totalorder %s20, 2
    %p269 = scmp.ne.s32.totalorder %s264, %s266
    %p270 = scmp.eq.s32.totalorder %s20, 0
    %p271 = por %p269, %p270
    %p272 = scmp.ne.s32.totalorder %s264, %s266
    %p273 = scmp.eq.s32.totalorder %s25, 2
    %p274 = por %p272, %p273
    %p275 = scmp.ne.s32.totalorder %s266, %s267
    %p276 = scmp.eq.s32.totalorder %s25, 0
    %p277 = por %p275, %p276
    %p278 = scmp.ne.s32.totalorder %s266, %s267
    %p279 = scmp.eq.s32.totalorder %s26, 2
    %p280 = por %p278, %p279
    %p282 = scmp.ne.s32.totalorder %s267, %s281
    %p283 = scmp.eq.s32.totalorder %s26, 0
    %p284 = por %p282, %p283
    %s286 = sadd.s32 %s285, 1
    %p289 = scmp.eq.s32.totalorder %s20, 2
    %p290 = scmp.ne.s32.totalorder %s285, %s287
    %p291 = scmp.eq.s32.totalorder %s20, 0
    %p292 = por %p290, %p291
    %p293 = scmp.ne.s32.totalorder %s285, %s287
    %p294 = scmp.eq.s32.totalorder %s25, 2
    %p295 = por %p293, %p294
    %p296 = scmp.ne.s32.totalorder %s287, %s288
    %p297 = scmp.eq.s32.totalorder %s25, 0
    %p298 = por %p296, %p297
    %p299 = scmp.ne.s32.totalorder %s287, %s288
    %p300 = scmp.eq.s32.totalorder %s26, 2
    %p301 = por %p299, %p300
    %p303 = scmp.ne.s32.totalorder %s288, %s302
    %p304 = scmp.eq.s32.totalorder %s26, 0
    %p305 = por %p303, %p304
    %s307 = sadd.s32 %s306, 1
    %p310 = scmp.eq.s32.totalorder %s20, 2
    %p311 = scmp.ne.s32.totalorder %s306, %s308
    %p312 = scmp.eq.s32.totalorder %s20, 0
    %p313 = por %p311, %p312
    %p314 = scmp.ne.s32.totalorder %s306, %s308
    %p315 = scmp.eq.s32.totalorder %s25, 2
    %p316 = por %p314, %p315
    %p317 = scmp.ne.s32.totalorder %s308, %s309
    %p318 = scmp.eq.s32.totalorder %s25, 0
    %p319 = por %p317, %p318
    %p320 = scmp.ne.s32.totalorder %s308, %s309
    %p321 = scmp.eq.s32.totalorder %s26, 2
    %p322 = por %p320, %p321
    %p324 = scmp.ne.s32.totalorder %s309, %s323
    %p325 = scmp.eq.s32.totalorder %s26, 0
    %p326 = por %p324, %p325
    %p327 = scmp.le.s32.totalorder 1, %s20
    %p328 = scmp.lt.s32.totalorder %s20, 4
    %p329 = pnand %p327, %p328
    %p330 = pneg %p329
    // Predicated region
    $region9: #{encoder_obs_forward.1} parent=5 // pred_check
      _
    $region10: #{encoder_obs_forward.1} parent=5 // pred_check_branch
      %332 = sbr.rel (%p329) target = $region12
    $region11: #{encoder_obs_forward.1} parent=5 // pred_region
      %s333 = ssub.s32 %s20, 1
      // Predicated region
      $region13: #{encoder_obs_forward.1} parent=11 // pred_check
        %p334 = pneg %p67
      $region14: #{encoder_obs_forward.1} parent=11 // pred_check_branch
        %336 = sbr.rel (%p334) target = $region16
      $region15: #{encoder_obs_forward.1} parent=11 // pred_region
        _
      $region16: #{encoder_obs_forward.1} parent=11 // pred_fallthru
        _
      // Predicated region
      $region17: #{encoder_obs_forward.1} parent=11 // pred_check
        %p337 = pneg %p88
      $region18: #{encoder_obs_forward.1} parent=11 // pred_check_branch
        %339 = sbr.rel (%p337) target = $region20
      $region19: #{encoder_obs_forward.1} parent=11 // pred_region
        _
      $region20: #{encoder_obs_forward.1} parent=11 // pred_fallthru
        _
      // Predicated region
      $region21: #{encoder_obs_forward.1} parent=11 // pred_check
        %p340 = pneg %p109
      $region22: #{encoder_obs_forward.1} parent=11 // pred_check_branch
        %342 = sbr.rel (%p340) target = $region24
      $region23: #{encoder_obs_forward.1} parent=11 // pred_region
        _
      $region24: #{encoder_obs_forward.1} parent=11 // pred_fallthru
        _
      // Predicated region
      $region25: #{encoder_obs_forward.1} parent=11 // pred_check
        %p343 = pneg %p130
      $region26: #{encoder_obs_forward.1} parent=11 // pred_check_branch
        %345 = sbr.rel (%p343) target = $region28
      $region27: #{encoder_obs_forward.1} parent=11 // pred_region
        _
      $region28: #{encoder_obs_forward.1} parent=11 // pred_fallthru
        _
      // Predicated region
      $region29: #{encoder_obs_forward.1} parent=11 // pred_check
        %p346 = pneg %p151
      $region30: #{encoder_obs_forward.1} parent=11 // pred_check_branch
        %348 = sbr.rel (%p346) target = $region32
      $region31: #{encoder_obs_forward.1} parent=11 // pred_region
        _
      $region32: #{encoder_obs_forward.1} parent=11 // pred_fallthru
        _
      // Predicated region
      $region33: #{encoder_obs_forward.1} parent=11 // pred_check
        %p349 = pneg %p172
      $region34: #{encoder_obs_forward.1} parent=11 // pred_check_branch
        %351 = sbr.rel (%p349) target = $region36
      $region35: #{encoder_obs_forward.1} parent=11 // pred_region
        _
      $region36: #{encoder_obs_forward.1} parent=11 // pred_fallthru
        _
      // Predicated region
      $region37: #{encoder_obs_forward.1} parent=11 // pred_check
        %p352 = pneg %p193
      $region38: #{encoder_obs_forward.1} parent=11 // pred_check_branch
        %354 = sbr.rel (%p352) target = $region40
      $region39: #{encoder_obs_forward.1} parent=11 // pred_region
        _
      $region40: #{encoder_obs_forward.1} parent=11 // pred_fallthru
        _
      // Predicated region
      $region41: #{encoder_obs_forward.1} parent=11 // pred_check
        %p355 = pneg %p214
      $region42: #{encoder_obs_forward.1} parent=11 // pred_check_branch
        %357 = sbr.rel (%p355) target = $region44
      $region43: #{encoder_obs_forward.1} parent=11 // pred_region
        _
      $region44: #{encoder_obs_forward.1} parent=11 // pred_fallthru
        _
      // Predicated region
      $region45: #{encoder_obs_forward.1} parent=11 // pred_check
        %p358 = pneg %p235
      $region46: #{encoder_obs_forward.1} parent=11 // pred_check_branch
        %360 = sbr.rel (%p358) target = $region48
      $region47: #{encoder_obs_forward.1} parent=11 // pred_region
        _
      $region48: #{encoder_obs_forward.1} parent=11 // pred_fallthru
        _
      // Predicated region
      $region49: #{encoder_obs_forward.1} parent=11 // pred_check
        %p361 = pneg %p256
      $region50: #{encoder_obs_forward.1} parent=11 // pred_check_branch
        %363 = sbr.rel (%p361) target = $region52
      $region51: #{encoder_obs_forward.1} parent=11 // pred_region
        _
      $region52: #{encoder_obs_forward.1} parent=11 // pred_fallthru
        _
      // Predicated region
      $region53: #{encoder_obs_forward.1} parent=11 // pred_check
        %p364 = pneg %p277
      $region54: #{encoder_obs_forward.1} parent=11 // pred_check_branch
        %366 = sbr.rel (%p364) target = $region56
      $region55: #{encoder_obs_forward.1} parent=11 // pred_region
        _
      $region56: #{encoder_obs_forward.1} parent=11 // pred_fallthru
        _
    $region12: #{encoder_obs_forward.1} parent=5 // pred_fallthru
      _
    %p367 = scmp.lt.s32.totalorder %s20, 3
    // Predicated region
    $region57: #{encoder_obs_forward.1} parent=5 // pred_check
      %p368 = pneg %p367
    $region58: #{encoder_obs_forward.1} parent=5 // pred_check_branch
      %370 = sbr.rel (%p368) target = $region60
    $region59: #{encoder_obs_forward.1} parent=5 // pred_region
      // Predicated region
      $region61: #{encoder_obs_forward.1} parent=59 // pred_check
        %p371 = pneg %p40
      $region62: #{encoder_obs_forward.1} parent=59 // pred_check_branch
        %373 = sbr.rel (%p371) target = $region64
      $region63: #{encoder_obs_forward.1} parent=59 // pred_region
        %p374 = scmp.lt.s32.totalorder %s20, 2
        %s375 = scalar_select %p374, %s20, 2
        %s376 = smul.addr %s375, 6
        %s377 = smul.addr %s376, 8
        %s378 = scalar_lea.vmem %s0, %s377
      $region64: #{encoder_obs_forward.1} parent=59 // pred_fallthru
        _
    $region60: #{encoder_obs_forward.1} parent=5 // pred_fallthru
      _
    %p379 = scmp.le.s32.totalorder 1, %s20
    %p380 = scmp.lt.s32.totalorder %s20, 4
    %p381 = pnand %p379, %p380
    %p382 = pneg %p381
    // Predicated region
    $region65: #{encoder_obs_forward.1} parent=5 // pred_check
      _
    $region66: #{encoder_obs_forward.1} parent=5 // pred_check_branch
      %384 = sbr.rel (%p381) target = $region68
    $region67: #{encoder_obs_forward.1} parent=5 // pred_region
      %s385 = ssub.s32 %s20, 1
      %p386 = scmp.lt.s32.totalorder %s25, 2
      %s387 = scalar_select %p386, %s25, 2
      %s388 = smul.addr %s387, 6
      %s389 = smul.addr %s388, 8
      %s390 = scalar_lea.vmem %s0, %s389
      %p391 = pneg %p46
      %p392 = pneg %p43
      %p393 = pneg %p67
      %p394 = pneg %p64
      %p395 = pneg %p88
      %p396 = pneg %p85
      %p397 = pneg %p109
      %p398 = pneg %p106
      %p399 = pneg %p130
      %p400 = pneg %p127
      %p401 = pneg %p151
      %p402 = pneg %p148
      %p403 = pneg %p172
      %p404 = pneg %p169
      %p405 = pneg %p193
      %p406 = pneg %p190
      %p407 = pneg %p214
      %p408 = pneg %p211
      %p409 = pneg %p235
      %p410 = pneg %p232
      %p411 = pneg %p256
      %p412 = pneg %p253
      %p413 = pneg %p277
      %p414 = pneg %p274
      %p415 = pneg %p298
      %p416 = pneg %p295
      %p417 = pneg %p319
      %p418 = pneg %p316
      %p419 = scmp.lt.s32.totalorder %s25, 2
      %s420 = scalar_select %p419, %s25, 2
      %s421 = smul.addr %s420, 6
      %s422 = smul.addr %s421, 8
      %s423 = scalar_lea.vmem %s0, %s422
      %p425 = scmp.eq.s32.totalorder %s25, 0
      // Predicated region
      $region69: #{encoder_obs_forward.1} parent=67 // pred_check
        %p426 = pneg %p425
      $region70: #{encoder_obs_forward.1} parent=67 // pred_check_branch
        %428 = sbr.rel (%p426) target = $region72
      $region71: #{encoder_obs_forward.1} parent=67 // pred_region
        %vm429 = vcmask 261120
        %430 = vst.msk [vmem:[#allocation2] sm:$0xff] %vm429, 0.0
        %431 = vst.msk [vmem:[#allocation3] sm:$0xff] %vm429, 0.0
      $region72: #{encoder_obs_forward.1} parent=67 // pred_fallthru
        _
      %v432 = vld [vmem:[%s7] sm:$0xf]
      %v433 = vld [vmem:[%s7 + $0x4] sm:$0xf]
      %v434 = vld [vmem:[%s8] sm:$0xf]
      %v435 = vld [vmem:[%s8 + $0x4] sm:$0xf]
      %v436 = vld [vmem:[%s423] sm:$0xff]
      %v437 = vld [vmem:[%s423 + $0x8] sm:$0xff]
      %v438 = vld [vmem:[%s423 + $0x10] sm:$0xf]
      %v439 = vld [vmem:[%s423 + $0x18] sm:$0xff]
      %v440 = vld [vmem:[%s423 + $0x20] sm:$0xff]
      %v441 = vld [vmem:[%s423 + $0x28] sm:$0xf]
      %v442 = vld [vmem:[%s1] sm:$0xf]
      %v443 = vld [vmem:[%s1 + $0x4] sm:$0xf]
      %v444 = vld [vmem:[%s1 + $0x8] sm:$0xf]
      %v445 = vld [vmem:[%s1 + $0xc] sm:$0xf]
      %v446 = vld [vmem:[%s1 + $0x10] sm:$0xf]
      %v447 = vld [vmem:[%s1 + $0x14] sm:$0xf]
      %v448 = vld [vmem:[%s1 + $0x18] sm:$0xf]
      %v449 = vld [vmem:[%s1 + $0x1c] sm:$0xf]
      %v450 = vpack.c.bf16 %v437, %v436
      %v451 = vpack.c.bf16 %v440, %v439
      %vm458 = vcmask 1046528
      %v459 = vrot.slane %v436, 1
      %v460 = vrot.slane %v437, 1
      %v461 = vsel %vm458, %v459, %v460
      %v462 = vrot.slane %v438, 1
      %v463 = vsel %vm458, %v460, %v462
      %v464 = vrot.slane %v439, 1
      %v465 = vrot.slane %v440, 1
      %v466 = vsel %vm458, %v464, %v465
      %v467 = vrot.slane %v441, 1
      %v468 = vsel %vm458, %v465, %v467
      %s473 = scalar_lea.vmem %s1, 32
      %v474 = vld [vmem:[%s473] sm:$0xf]
      %v475 = vld [vmem:[%s473 + $0x4] sm:$0xf]
      %v476 = vld [vmem:[%s473 + $0x8] sm:$0xf]
      %v477 = vld [vmem:[%s473 + $0xc] sm:$0xf]
      %v478 = vld [vmem:[%s473 + $0x10] sm:$0xf]
      %v479 = vld [vmem:[%s473 + $0x14] sm:$0xf]
      %v480 = vld [vmem:[%s473 + $0x18] sm:$0xf]
      %v481 = vld [vmem:[%s473 + $0x1c] sm:$0xf]
      %v482 = vpack.c.bf16 %v463, %v461
      %v483 = vpack.c.bf16 %v468, %v466
      %v492 = vunpack.c.l.b16 %v474
      %v493 = vunpack.c.l.b16 %v475
      %v494 = vunpack.c.l.b16 %v476
      %v495 = vunpack.c.l.b16 %v477
      %v496 = vunpack.c.l.b16 %v478
      %v497 = vunpack.c.l.b16 %v479
      %v498 = vunpack.c.l.b16 %v480
      %v499 = vunpack.c.l.b16 %v481
      %v500 = vpack.c.b16 %v493, %v492
      %v501 = vpack.c.b16 %v495, %v494
      %v502 = vpack.c.b16 %v497, %v496
      %v503 = vpack.c.b16 %v499, %v498
      %vm508 = vcmask 523264
      %v510 = vsel %vm508, %v482, 0
      %v513 = vsel %vm508, %v483, 0
      %515 = vmatprep.subr.bf16.mxu0 0
      %516 = vmatpush1.bf16.msra.mxu0 %v500
      %517 = vmatprep.subr.bf16.mxu0 0
      %518 = vmatpush1.bf16.msra.mxu0 %v501
      %519 = vmatprep.subr.bf16.mxu0 0
      %520 = vmatpush1.bf16.msra.mxu0 %v502
      %521 = vmatprep.subr.bf16.mxu0 0
      %522 = vmatpush1.bf16.msra.mxu0 %v503
      %523 = vmatprep.subr.bf16.mxu0 0
      %524 = vmatpush1.bf16.msra.mxu0 0
      %525 = vmatprep.subr.bf16.mxu0 0
      %526 = vmatpush1.bf16.msra.mxu0 0
      %527 = vmatprep.subr.bf16.mxu0 0
      %528 = vmatpush1.bf16.msra.mxu0 0
      %529 = vmatprep.subr.bf16.mxu0 0
      %530 = vmatpush1.bf16.msra.mxu0 0
      %531 = vmatprep.subr.bf16.mxu0 0
      %532 = vmatpush1.bf16.msra.mxu0 0
      %533 = vmatprep.subr.bf16.mxu0 0
      %534 = vmatpush1.bf16.msra.mxu0 0
      %535 = vmatprep.subr.bf16.mxu0 0
      %536 = vmatpush1.bf16.msra.mxu0 0
      %537 = vmatprep.subr.bf16.mxu0 0
      %538 = vmatpush1.bf16.msra.mxu0 0
      %539 = vmatprep.subr.bf16.mxu0 0
      %540 = vmatpush1.bf16.msra.mxu0 0
      %541 = vmatprep.subr.bf16.mxu0 0
      %542 = vmatpush1.bf16.msra.mxu0 0
      %543 = vmatprep.subr.bf16.mxu0 0
      %544 = vmatpush1.bf16.msra.mxu0 0
      %545 = vmatprep.subr.bf16.mxu0 0
      %546 = vmatpush1.bf16.msra.mxu0 0
      %547 = vmatprep.mubr.bf16.mxu0 0
      %548 = vmatmul.mubr.bf16.gmra.mrb[0].mxu0 %v510
      %v549 = vpop.f32.mrb[0].mxu0
      %v550 = vadd.f32 0.0, %v549
      %v551 = vpop.f32.mrb[0].mxu0
      %v552 = vpop.f32.mrb[0].mxu0
      %v553 = vadd.f32 0.0, %v552
      %v554 = vpop.f32.mrb[0].mxu0
      %555 = vmatprep.mubr.bf16.mxu0 0
      %556 = vmatmul.mubr.bf16.gmra.mrb[0].mxu0 %v513
      %v557 = vpop.f32.mrb[0].mxu0
      %v558 = vadd.f32 0.0, %v557
      %v559 = vpop.f32.mrb[0].mxu0
      %v560 = vpop.f32.mrb[0].mxu0
      %v561 = vadd.f32 0.0, %v560
      %v562 = vpop.f32.mrb[0].mxu0
      %563 = vdwg.mxu0
      %v572 = vunpack.c.l.b16 %v442
      %v573 = vunpack.c.l.b16 %v443
      %v574 = vunpack.c.l.b16 %v444
      %v575 = vunpack.c.l.b16 %v445
      %v576 = vunpack.c.l.b16 %v446
      %v577 = vunpack.c.l.b16 %v447
      %v578 = vunpack.c.l.b16 %v448
      %v579 = vunpack.c.l.b16 %v449
      %v580 = vpack.c.b16 %v573, %v572
      %v581 = vpack.c.b16 %v575, %v574
      %v582 = vpack.c.b16 %v577, %v576
      %v583 = vpack.c.b16 %v579, %v578
      %v589 = vsel %vm508, %v450, 0
      %v592 = vsel %vm508, %v451, 0
      %594 = vmatprep.subr.bf16.mxu0 0
      %595 = vmatpush1.bf16.msra.mxu0 %v580
      %596 = vmatprep.subr.bf16.mxu0 0
      %597 = vmatpush1.bf16.msra.mxu0 %v581
      %598 = vmatprep.subr.bf16.mxu0 0
      %599 = vmatpush1.bf16.msra.mxu0 %v582
      %600 = vmatprep.subr.bf16.mxu0 0
      %601 = vmatpush1.bf16.msra.mxu0 %v583
      %602 = vmatprep.subr.bf16.mxu0 0
      %603 = vmatpush1.bf16.msra.mxu0 0
      %604 = vmatprep.subr.bf16.mxu0 0
      %605 = vmatpush1.bf16.msra.mxu0 0
      %606 = vmatprep.subr.bf16.mxu0 0
      %607 = vmatpush1.bf16.msra.mxu0 0
      %608 = vmatprep.subr.bf16.mxu0 0
      %609 = vmatpush1.bf16.msra.mxu0 0
      %610 = vmatprep.subr.bf16.mxu0 0
      %611 = vmatpush1.bf16.msra.mxu0 0
      %612 = vmatprep.subr.bf16.mxu0 0
      %613 = vmatpush1.bf16.msra.mxu0 0
      %614 = vmatprep.subr.bf16.mxu0 0
      %615 = vmatpush1.bf16.msra.mxu0 0
      %616 = vmatprep.subr.bf16.mxu0 0
      %617 = vmatpush1.bf16.msra.mxu0 0
      %618 = vmatprep.subr.bf16.mxu0 0
      %619 = vmatpush1.bf16.msra.mxu0 0
      %620 = vmatprep.subr.bf16.mxu0 0
      %621 = vmatpush1.bf16.msra.mxu0 0
      %622 = vmatprep.subr.bf16.mxu0 0
      %623 = vmatpush1.bf16.msra.mxu0 0
      %624 = vmatprep.subr.bf16.mxu0 0
      %625 = vmatpush1.bf16.msra.mxu0 0
      %626 = vmatprep.mubr.bf16.mxu0 0
      %627 = vmatmul.mubr.bf16.gmra.mrb[0].mxu0 %v589
      %v628 = vpop.f32.mrb[0].mxu0
      %v629 = vadd.f32 %v550, %v628
      %v630 = vpop.f32.mrb[0].mxu0
      %v631 = vpop.f32.mrb[0].mxu0
      %v632 = vadd.f32 %v553, %v631
      %v633 = vpop.f32.mrb[0].mxu0
      %634 = vmatprep.mubr.bf16.mxu0 0
      %635 = vmatmul.mubr.bf16.gmra.mrb[0].mxu0 %v592
      %v636 = vpop.f32.mrb[0].mxu0
      %v637 = vadd.f32 %v558, %v636
      %v638 = vpop.f32.mrb[0].mxu0
      %v639 = vpop.f32.mrb[0].mxu0
      %v640 = vadd.f32 %v561, %v639
      %v641 = vpop.f32.mrb[0].mxu0
      %642 = vdwg.mxu0
      %vm643 = vcmask 1045504
      %v644 = vrot.slane %v436, 2
      %v645 = vrot.slane %v437, 2
      %v646 = vsel %vm643, %v644, %v645
      %v647 = vrot.slane %v438, 2
      %v648 = vsel %vm643, %v645, %v647
      %v649 = vrot.slane %v439, 2
      %v650 = vrot.slane %v440, 2
      %v651 = vsel %vm643, %v649, %v650
      %v652 = vrot.slane %v441, 2
      %v653 = vsel %vm643, %v650, %v652
      %s658 = scalar_lea.vmem %s1, 64
      %v659 = vld [vmem:[%s658] sm:$0xf]
      %v660 = vld [vmem:[%s658 + $0x4] sm:$0xf]
      %v661 = vld [vmem:[%s658 + $0x8] sm:$0xf]
      %v662 = vld [vmem:[%s658 + $0xc] sm:$0xf]
      %v663 = vld [vmem:[%s658 + $0x10] sm:$0xf]
      %v664 = vld [vmem:[%s658 + $0x14] sm:$0xf]
      %v665 = vld [vmem:[%s658 + $0x18] sm:$0xf]
      %v666 = vld [vmem:[%s658 + $0x1c] sm:$0xf]
      %v667 = vpack.c.bf16 %v648, %v646
      %v668 = vpack.c.bf16 %v653, %v651
      %v677 = vunpack.c.l.b16 %v659
      %v678 = vunpack.c.l.b16 %v660
      %v679 = vunpack.c.l.b16 %v661
      %v680 = vunpack.c.l.b16 %v662
      %v681 = vunpack.c.l.b16 %v663
      %v682 = vunpack.c.l.b16 %v664
      %v683 = vunpack.c.l.b16 %v665
      %v684 = vunpack.c.l.b16 %v666
      %v685 = vpack.c.b16 %v678, %v677
      %v686 = vpack.c.b16 %v680, %v679
      %v687 = vpack.c.b16 %v682, %v681
      %v688 = vpack.c.b16 %v684, %v683
      %v694 = vsel %vm508, %v667, 0
      %v697 = vsel %vm508, %v668, 0
      %699 = vmatprep.subr.bf16.mxu0 0
      %700 = vmatpush1.bf16.msra.mxu0 %v685
      %701 = vmatprep.subr.bf16.mxu0 0
      %702 = vmatpush1.bf16.msra.mxu0 %v686
      %703 = vmatprep.subr.bf16.mxu0 0
      %704 = vmatpush1.bf16.msra.mxu0 %v687
      %705 = vmatprep.subr.bf16.mxu0 0
      %706 = vmatpush1.bf16.msra.mxu0 %v688
      %707 = vmatprep.subr.bf16.mxu0 0
      %708 = vmatpush1.bf16.msra.mxu0 0
      %709 = vmatprep.subr.bf16.mxu0 0
      %710 = vmatpush1.bf16.msra.mxu0 0
      %711 = vmatprep.subr.bf16.mxu0 0
      %712 = vmatpush1.bf16.msra.mxu0 0
      %713 = vmatprep.subr.bf16.mxu0 0
      %714 = vmatpush1.bf16.msra.mxu0 0
      %715 = vmatprep.subr.bf16.mxu0 0
      %716 = vmatpush1.bf16.msra.mxu0 0
      %717 = vmatprep.subr.bf16.mxu0 0
      %718 = vmatpush1.bf16.msra.mxu0 0
      %719 = vmatprep.subr.bf16.mxu0 0
      %720 = vmatpush1.bf16.msra.mxu0 0
      %721 = vmatprep.subr.bf16.mxu0 0
      %722 = vmatpush1.bf16.msra.mxu0 0
      %723 = vmatprep.subr.bf16.mxu0 0
      %724 = vmatpush1.bf16.msra.mxu0 0
      %725 = vmatprep.subr.bf16.mxu0 0
      %726 = vmatpush1.bf16.msra.mxu0 0
      %727 = vmatprep.subr.bf16.mxu0 0
      %728 = vmatpush1.bf16.msra.mxu0 0
      %729 = vmatprep.subr.bf16.mxu0 0
      %730 = vmatpush1.bf16.msra.mxu0 0
      %731 = vmatprep.mubr.bf16.mxu0 0
      %732 = vmatmul.mubr.bf16.gmra.mrb[0].mxu0 %v694
      %v733 = vpop.f32.mrb[0].mxu0
      %v734 = vadd.f32 0.0, %v733
      %v735 = vpop.f32.mrb[0].mxu0
      %v736 = vpop.f32.mrb[0].mxu0
      %v737 = vadd.f32 0.0, %v736
      %v738 = vpop.f32.mrb[0].mxu0
      %739 = vmatprep.mubr.bf16.mxu0 0
      %740 = vmatmul.mubr.bf16.gmra.mrb[0].mxu0 %v697
      %v741 = vpop.f32.mrb[0].mxu0
      %v742 = vadd.f32 0.0, %v741
      %v743 = vpop.f32.mrb[0].mxu0
      %v744 = vpop.f32.mrb[0].mxu0
      %v745 = vadd.f32 0.0, %v744
      %v746 = vpop.f32.mrb[0].mxu0
      %747 = vdwg.mxu0
      %v748 = vadd.f32 %v629, %v734
      %v749 = vadd.f32 %v632, %v737
      %v750 = vadd.f32 %v637, %v742
      %v751 = vadd.f32 %v640, %v745
      %vm752 = vcmask 1044480
      %v753 = vrot.slane %v436, 3
      %v754 = vrot.slane %v437, 3
      %v755 = vsel %vm752, %v753, %v754
      %v756 = vrot.slane %v438, 3
      %v757 = vsel %vm752, %v754, %v756
      %v758 = vrot.slane %v439, 3
      %v759 = vrot.slane %v440, 3
      %v760 = vsel %vm752, %v758, %v759
      %v761 = vrot.slane %v441, 3
      %v762 = vsel %vm752, %v759, %v761
      %s767 = scalar_lea.vmem %s1, 96
      %v768 = vld [vmem:[%s767] sm:$0xf]
      %v769 = vld [vmem:[%s767 + $0x4] sm:$0xf]
      %v770 = vld [vmem:[%s767 + $0x8] sm:$0xf]
      %v771 = vld [vmem:[%s767 + $0xc] sm:$0xf]
      %v772 = vld [vmem:[%s767 + $0x10] sm:$0xf]
      %v773 = vld [vmem:[%s767 + $0x14] sm:$0xf]
      %v774 = vld [vmem:[%s767 + $0x18] sm:$0xf]
      %v775 = vld [vmem:[%s767 + $0x1c] sm:$0xf]
      %v776 = vpack.c.bf16 %v757, %v755
      %v777 = vpack.c.bf16 %v762, %v760
      %v786 = vunpack.c.l.b16 %v768
      %v787 = vunpack.c.l.b16 %v769
      %v788 = vunpack.c.l.b16 %v770
      %v789 = vunpack.c.l.b16 %v771
      %v790 = vunpack.c.l.b16 %v772
      %v791 = vunpack.c.l.b16 %v773
      %v792 = vunpack.c.l.b16 %v774
      %v793 = vunpack.c.l.b16 %v775
      %v794 = vpack.c.b16 %v787, %v786
      %v795 = vpack.c.b16 %v789, %v788
      %v796 = vpack.c.b16 %v791, %v790
      %v797 = vpack.c.b16 %v793, %v792
      %v803 = vsel %vm508, %v776, 0
      %v806 = vsel %vm508, %v777, 0
      %808 = vmatprep.subr.bf16.mxu0 0
      %809 = vmatpush1.bf16.msra.mxu0 %v794
      %810 = vmatprep.subr.bf16.mxu0 0
      %811 = vmatpush1.bf16.msra.mxu0 %v795
      %812 = vmatprep.subr.bf16.mxu0 0
      %813 = vmatpush1.bf16.msra.mxu0 %v796
      %814 = vmatprep.subr.bf16.mxu0 0
      %815 = vmatpush1.bf16.msra.mxu0 %v797
      %816 = vmatprep.subr.bf16.mxu0 0
      %817 = vmatpush1.bf16.msra.mxu0 0
      %818 = vmatprep.subr.bf16.mxu0 0
      %819 = vmatpush1.bf16.msra.mxu0 0
      %820 = vmatprep.subr.bf16.mxu0 0
      %821 = vmatpush1.bf16.msra.mxu0 0
      %822 = vmatprep.subr.bf16.mxu0 0
      %823 = vmatpush1.bf16.msra.mxu0 0
      %824 = vmatprep.subr.bf16.mxu0 0
      %825 = vmatpush1.bf16.msra.mxu0 0
      %826 = vmatprep.subr.bf16.mxu0 0
      %827 = vmatpush1.bf16.msra.mxu0 0
      %828 = vmatprep.subr.bf16.mxu0 0
      %829 = vmatpush1.bf16.msra.mxu0 0
      %830 = vmatprep.subr.bf16.mxu0 0
      %831 = vmatpush1.bf16.msra.mxu0 0
      %832 = vmatprep.subr.bf16.mxu0 0
      %833 = vmatpush1.bf16.msra.mxu0 0
      %834 = vmatprep.subr.bf16.mxu0 0
      %835 = vmatpush1.bf16.msra.mxu0 0
      %836 = vmatprep.subr.bf16.mxu0 0
      %837 = vmatpush1.bf16.msra.mxu0 0
      %838 = vmatprep.subr.bf16.mxu0 0
      %839 = vmatpush1.bf16.msra.mxu0 0
      %840 = vmatprep.mubr.bf16.mxu0 0
      %841 = vmatmul.mubr.bf16.gmra.mrb[0].mxu0 %v803
      %v842 = vpop.f32.mrb[0].mxu0
      %v843 = vadd.f32 0.0, %v842
      %v844 = vpop.f32.mrb[0].mxu0
      %v845 = vpop.f32.mrb[0].mxu0
      %v846 = vadd.f32 0.0, %v845
      %v847 = vpop.f32.mrb[0].mxu0
      %848 = vmatprep.mubr.bf16.mxu0 0
      %849 = vmatmul.mubr.bf16.gmra.mrb[0].mxu0 %v806
      %v850 = vpop.f32.mrb[0].mxu0
      %v851 = vadd.f32 0.0, %v850
      %v852 = vpop.f32.mrb[0].mxu0
      %v853 = vpop.f32.mrb[0].mxu0
      %v854 = vadd.f32 0.0, %v853
      %v855 = vpop.f32.mrb[0].mxu0
      %856 = vdwg.mxu0
      %v857 = vadd.f32 %v748, %v843
      %v858 = vadd.f32 %v749, %v846
      %v859 = vadd.f32 %v750, %v851
      %v860 = vadd.f32 %v751, %v854
      %vm861 = vcmask 1043456
      %v862 = vrot.slane %v436, 4
      %v863 = vrot.slane %v437, 4
      %v864 = vsel %vm861, %v862, %v863
      %v865 = vrot.slane %v438, 4
      %v866 = vsel %vm861, %v863, %v865
      %v867 = vrot.slane %v439, 4
      %v868 = vrot.slane %v440, 4
      %v869 = vsel %vm861, %v867, %v868
      %v870 = vrot.slane %v441, 4
      %v871 = vsel %vm861, %v868, %v870
      %s876 = scalar_lea.vmem %s1, 128
      %v877 = vld [vmem:[%s876] sm:$0xf]
      %v878 = vld [vmem:[%s876 + $0x4] sm:$0xf]
      %v879 = vld [vmem:[%s876 + $0x8] sm:$0xf]
      %v880 = vld [vmem:[%s876 + $0xc] sm:$0xf]
      %v881 = vld [vmem:[%s876 + $0x10] sm:$0xf]
      %v882 = vld [vmem:[%s876 + $0x14] sm:$0xf]
      %v883 = vld [vmem:[%s876 + $0x18] sm:$0xf]
      %v884 = vld [vmem:[%s876 + $0x1c] sm:$0xf]
      %v885 = vpack.c.bf16 %v866, %v864
      %v886 = vpack.c.bf16 %v871, %v869
      %v895 = vunpack.c.l.b16 %v877
      %v896 = vunpack.c.l.b16 %v878
      %v897 = vunpack.c.l.b16 %v879
      %v898 = vunpack.c.l.b16 %v880
      %v899 = vunpack.c.l.b16 %v881
      %v900 = vunpack.c.l.b16 %v882
      %v901 = vunpack.c.l.b16 %v883
      %v902 = vunpack.c.l.b16 %v884
      %v903 = vpack.c.b16 %v896, %v895
      %v904 = vpack.c.b16 %v898, %v897
      %v905 = vpack.c.b16 %v900, %v899
      %v906 = vpack.c.b16 %v902, %v901
      %v912 = vsel %vm508, %v885, 0
      %v915 = vsel %vm508, %v886, 0
      %917 = vmatprep.subr.bf16.mxu0 0
      %918 = vmatpush1.bf16.msra.mxu0 %v903
      %919 = vmatprep.subr.bf16.mxu0 0
      %920 = vmatpush1.bf16.msra.mxu0 %v904
      %921 = vmatprep.subr.bf16.mxu0 0
      %922 = vmatpush1.bf16.msra.mxu0 %v905
      %923 = vmatprep.subr.bf16.mxu0 0
      %924 = vmatpush1.bf16.msra.mxu0 %v906
      %925 = vmatprep.subr.bf16.mxu0 0
      %926 = vmatpush1.bf16.msra.mxu0 0
      %927 = vmatprep.subr.bf16.mxu0 0
      %928 = vmatpush1.bf16.msra.mxu0 0
      %929 = vmatprep.subr.bf16.mxu0 0
      %930 = vmatpush1.bf16.msra.mxu0 0
      %931 = vmatprep.subr.bf16.mxu0 0
      %932 = vmatpush1.bf16.msra.mxu0 0
      %933 = vmatprep.subr.bf16.mxu0 0
      %934 = vmatpush1.bf16.msra.mxu0 0
      %935 = vmatprep.subr.bf16.mxu0 0
      %936 = vmatpush1.bf16.msra.mxu0 0
      %937 = vmatprep.subr.bf16.mxu0 0
      %938 = vmatpush1.bf16.msra.mxu0 0
      %939 = vmatprep.subr.bf16.mxu0 0
      %940 = vmatpush1.bf16.msra.mxu0 0
      %941 = vmatprep.subr.bf16.mxu0 0
      %942 = vmatpush1.bf16.msra.mxu0 0
      %943 = vmatprep.subr.bf16.mxu0 0
      %944 = vmatpush1.bf16.msra.mxu0 0
      %945 = vmatprep.subr.bf16.mxu0 0
      %946 = vmatpush1.bf16.msra.mxu0 0
      %947 = vmatprep.subr.bf16.mxu0 0
      %948 = vmatpush1.bf16.msra.mxu0 0
      %949 = vmatprep.mubr.bf16.mxu0 0
      %950 = vmatmul.mubr.bf16.gmra.mrb[0].mxu0 %v912
      %v951 = vpop.f32.mrb[0].mxu0
      %v952 = vadd.f32 0.0, %v951
      %v953 = vpop.f32.mrb[0].mxu0
      %v954 = vpop.f32.mrb[0].mxu0
      %v955 = vadd.f32 0.0, %v954
      %v956 = vpop.f32.mrb[0].mxu0
      %957 = vmatprep.mubr.bf16.mxu0 0
      %958 = vmatmul.mubr.bf16.gmra.mrb[0].mxu0 %v915
      %v959 = vpop.f32.mrb[0].mxu0
      %v960 = vadd.f32 0.0, %v959
      %v961 = vpop.f32.mrb[0].mxu0
      %v962 = vpop.f32.mrb[0].mxu0
      %v963 = vadd.f32 0.0, %v962
      %v964 = vpop.f32.mrb[0].mxu0
      %965 = vdwg.mxu0
      %v966 = vadd.f32 %v857, %v952
      %v967 = vadd.f32 %v858, %v955
      %v968 = vadd.f32 %v859, %v960
      %v969 = vadd.f32 %v860, %v963
      %v970 = vld [vmem:[%s4] sm:$0x1]
      %v972 = vlaneseq
      %v973 = vshrl.u32 %v972, 7
      %v974 = vsub.s32 0, %v973
      %v975 = vrot.slane %v970, %v974
      %v977 = vadd.f32 %v966, %v975
      %v978 = vadd.f32 %v967, %v975
      %v979 = vadd.f32 %v968, %v975
      %v980 = vadd.f32 %v969, %v975
      %v981 = vmax.f32 %v977, 0.0
      %v982 = vmax.f32 %v978, 0.0
      %v983 = vmax.f32 %v979, 0.0
      %v984 = vmax.f32 %v980, 0.0
      %989 = vrot.lane.b32.xlu0 %v981, 96
      %v990 = vpop.permute.xlu0 %989
      %991 = vrot.lane.b32.xlu0 %v982, 96
      %v992 = vpop.permute.xlu0 %991
      %993 = vrot.lane.b32.xlu0 %v983, 96
      %v994 = vpop.permute.xlu0 %993
      %995 = vrot.lane.b32.xlu0 %v984, 96
      %v996 = vpop.permute.xlu0 %995
      %v1001 = vmax.f32 %v981, %v990
      %v1002 = vmax.f32 %v982, %v992
      %v1003 = vmax.f32 %v983, %v994
      %v1004 = vmax.f32 %v984, %v996
      %v1005 = vpack.c.bf16 %v1002, %v1001
      %v1006 = vpack.c.bf16 %v1004, %v1003
      %v1009 = vunpack.c.l.b16 %v432
      %v1010 = vunpack.c.l.b16 %v433
      %v1011 = vpack.c.b16 %v1010, %v1009
      %vm1012 = vcmask 261120
      %v1014 = vsel %vm1012, %v1011, 0
      %1016 = vmatprep.subr.bf16.mxu0 0
      %1017 = vmatpush1.bf16.msra.mxu0 %v1005
      %1018 = vmatprep.subr.bf16.mxu0 0
      %1019 = vmatpush1.bf16.msra.mxu0 %v1006
      %1020 = vmatprep.subr.bf16.mxu0 0
      %1021 = vmatpush1.bf16.msra.mxu0 0
      %1022 = vmatprep.subr.bf16.mxu0 0
      %1023 = vmatpush1.bf16.msra.mxu0 0
      %1024 = vmatprep.subr.bf16.mxu0 0
      %1025 = vmatpush1.bf16.msra.mxu0 0
      %1026 = vmatprep.subr.bf16.mxu0 0
      %1027 = vmatpush1.bf16.msra.mxu0 0
      %1028 = vmatprep.subr.bf16.mxu0 0
      %1029 = vmatpush1.bf16.msra.mxu0 0
      %1030 = vmatprep.subr.bf16.mxu0 0
      %1031 = vmatpush1.bf16.msra.mxu0 0
      %1032 = vmatprep.subr.bf16.mxu0 0
      %1033 = vmatpush1.bf16.msra.mxu0 0
      %1034 = vmatprep.subr.bf16.mxu0 0
      %1035 = vmatpush1.bf16.msra.mxu0 0
      %1036 = vmatprep.subr.bf16.mxu0 0
      %1037 = vmatpush1.bf16.msra.mxu0 0
      %1038 = vmatprep.subr.bf16.mxu0 0
      %1039 = vmatpush1.bf16.msra.mxu0 0
      %1040 = vmatprep.subr.bf16.mxu0 0
      %1041 = vmatpush1.bf16.msra.mxu0 0
      %1042 = vmatprep.subr.bf16.mxu0 0
      %1043 = vmatpush1.bf16.msra.mxu0 0
      %1044 = vmatprep.subr.bf16.mxu0 0
      %1045 = vmatpush1.bf16.msra.mxu0 0
      %1046 = vmatprep.subr.bf16.mxu0 0
      %1047 = vmatpush1.bf16.msra.mxu0 0
      %1048 = vmatprep.mubr.bf16.mxu0 0
      %1049 = vmatmul.mubr.bf16.gmra.mrb[0].mxu0 %v1014
      %v1050 = vpop.f32.mrb[0].mxu0
      %v1051 = vadd.f32 0.0, %v1050
      %v1052 = vpop.f32.mrb[0].mxu0
      %v1053 = vpop.f32.mrb[0].mxu0
      %v1054 = vadd.f32 0.0, %v1053
      %v1055 = vpop.f32.mrb[0].mxu0
      %1056 = vdwg.mxu0
      %v1059 = vunpack.c.l.b16 %v434
      %v1060 = vunpack.c.l.b16 %v435
      %v1061 = vpack.c.b16 %v1060, %v1059
      %v1063 = vsel %vm1012, %v1061, 0
      %1065 = vmatprep.subr.bf16.mxu0 0
      %1066 = vmatpush1.bf16.msra.mxu0 %v1005
      %1067 = vmatprep.subr.bf16.mxu0 0
      %1068 = vmatpush1.bf16.msra.mxu0 %v1006
      %1069 = vmatprep.subr.bf16.mxu0 0
      %1070 = vmatpush1.bf16.msra.mxu0 0
      %1071 = vmatprep.subr.bf16.mxu0 0
      %1072 = vmatpush1.bf16.msra.mxu0 0
      %1073 = vmatprep.subr.bf16.mxu0 0
      %1074 = vmatpush1.bf16.msra.mxu0 0
      %1075 = vmatprep.subr.bf16.mxu0 0
      %1076 = vmatpush1.bf16.msra.mxu0 0
      %1077 = vmatprep.subr.bf16.mxu0 0
      %1078 = vmatpush1.bf16.msra.mxu0 0
      %1079 = vmatprep.subr.bf16.mxu0 0
      %1080 = vmatpush1.bf16.msra.mxu0 0
      %1081 = vmatprep.subr.bf16.mxu0 0
      %1082 = vmatpush1.bf16.msra.mxu0 0
      %1083 = vmatprep.subr.bf16.mxu0 0
      %1084 = vmatpush1.bf16.msra.mxu0 0
      %1085 = vmatprep.subr.bf16.mxu0 0
      %1086 = vmatpush1.bf16.msra.mxu0 0
      %1087 = vmatprep.subr.bf16.mxu0 0
      %1088 = vmatpush1.bf16.msra.mxu0 0
      %1089 = vmatprep.subr.bf16.mxu0 0
      %1090 = vmatpush1.bf16.msra.mxu0 0
      %1091 = vmatprep.subr.bf16.mxu0 0
      %1092 = vmatpush1.bf16.msra.mxu0 0
      %1093 = vmatprep.subr.bf16.mxu0 0
      %1094 = vmatpush1.bf16.msra.mxu0 0
      %1095 = vmatprep.subr.bf16.mxu0 0
      %1096 = vmatpush1.bf16.msra.mxu0 0
      %1097 = vmatprep.mubr.bf16.mxu0 0
      %1098 = vmatmul.mubr.bf16.gmra.mrb[0].mxu0 %v1063
      %v1099 = vpop.f32.mrb[0].mxu0
      %v1100 = vadd.f32 0.0, %v1099
      %v1101 = vpop.f32.mrb[0].mxu0
      %v1102 = vpop.f32.mrb[0].mxu0
      %v1103 = vadd.f32 0.0, %v1102
      %v1104 = vpop.f32.mrb[0].mxu0
      %1105 = vdwg.mxu0
      %v1106 = vmax.f32 %v1051, %v1100
      %v1107 = vmax.f32 %v1054, %v1103
      %v1109 = vrot.slane %v1106, 6
      %v1112 = vrot.slane %v1107, 2
      %vm1114 = vcmask 1041408
      %v1115 = vsel %vm1114, 0.0, %v1109
      %v1116 = vsel %vm1114, %v1109, 0.0
      %v1117 = vsel %vm861, %v1116, 0.0
      %v1118 = vsel %vm643, %v1117, %v1112
      %v1119 = vsel %vm643, %v1112, 0.0
      %v1122 = vrot.slane %v1118, 4
      %v1123 = vrot.slane %v1119, 4
      %v1124 = vsel %vm861, %v1122, %v1123
      %v1126 = vld [vmem:[%s2] sm:$0xf]
      %v1127 = vld [vmem:[%s2 + $0x4] sm:$0xf]
      %v1128 = vld [vmem:[%s2 + $0x8] sm:$0xf]
      %v1129 = vld [vmem:[%s2 + $0xc] sm:$0xf]
      %v1130 = vpack.c.bf16 %v1124, %v1115
      %v1132 = vrot.slane %v1115, 1
      %v1133 = vrot.slane %v1118, 1
      %v1134 = vsel %vm458, %v1132, %v1133
      %vm1136 = vcmask 1042432
      %v1137 = vrot.slane %v1118, 5
      %v1138 = vrot.slane %v1119, 5
      %v1139 = vsel %vm1136, %v1137, %v1138
      %s1141 = scalar_lea.vmem %s2, 16
      %v1142 = vld [vmem:[%s1141] sm:$0xf]
      %v1143 = vld [vmem:[%s1141 + $0x4] sm:$0xf]
      %v1144 = vld [vmem:[%s1141 + $0x8] sm:$0xf]
      %v1145 = vld [vmem:[%s1141 + $0xc] sm:$0xf]
      %v1146 = vpack.c.bf16 %v1139, %v1134
      %v1151 = vunpack.c.l.b16 %v1142
      %v1152 = vunpack.c.l.b16 %v1143
      %v1153 = vunpack.c.l.b16 %v1144
      %v1154 = vunpack.c.l.b16 %v1145
      %v1155 = vpack.c.b16 %v1152, %v1151
      %v1156 = vpack.c.b16 %v1154, %v1153
      %v1160 = vsel %vm1012, %v1146, 0
      %1162 = vmatprep.subr.bf16.mxu0 0
      %1163 = vmatpush1.bf16.msra.mxu0 %v1155
      %1164 = vmatprep.subr.bf16.mxu0 0
      %1165 = vmatpush1.bf16.msra.mxu0 %v1156
      %1166 = vmatprep.subr.bf16.mxu0 0
      %1167 = vmatpush1.bf16.msra.mxu0 0
      %1168 = vmatprep.subr.bf16.mxu0 0
      %1169 = vmatpush1.bf16.msra.mxu0 0
      %1170 = vmatprep.subr.bf16.mxu0 0
      %1171 = vmatpush1.bf16.msra.mxu0 0
      %1172 = vmatprep.subr.bf16.mxu0 0
      %1173 = vmatpush1.bf16.msra.mxu0 0
      %1174 = vmatprep.subr.bf16.mxu0 0
      %1175 = vmatpush1.bf16.msra.mxu0 0
      %1176 = vmatprep.subr.bf16.mxu0 0
      %1177 = vmatpush1.bf16.msra.mxu0 0
      %1178 = vmatprep.subr.bf16.mxu0 0
      %1179 = vmatpush1.bf16.msra.mxu0 0
      %1180 = vmatprep.subr.bf16.mxu0 0
      %1181 = vmatpush1.bf16.msra.mxu0 0
      %1182 = vmatprep.subr.bf16.mxu0 0
      %1183 = vmatpush1.bf16.msra.mxu0 0
      %1184 = vmatprep.subr.bf16.mxu0 0
      %1185 = vmatpush1.bf16.msra.mxu0 0
      %1186 = vmatprep.subr.bf16.mxu0 0
      %1187 = vmatpush1.bf16.msra.mxu0 0
      %1188 = vmatprep.subr.bf16.mxu0 0
      %1189 = vmatpush1.bf16.msra.mxu0 0
      %1190 = vmatprep.subr.bf16.mxu0 0
      %1191 = vmatpush1.bf16.msra.mxu0 0
      %1192 = vmatprep.subr.bf16.mxu0 0
      %1193 = vmatpush1.bf16.msra.mxu0 0
      %1194 = vmatprep.mubr.bf16.mxu0 0
      %1195 = vmatmul.mubr.bf16.gmra.mrb[0].mxu0 %v1160
      %v1196 = vpop.f32.mrb[0].mxu0
      %v1197 = vadd.f32 0.0, %v1196
      %v1198 = vpop.f32.mrb[0].mxu0
      %v1199 = vpop.f32.mrb[0].mxu0
      %v1200 = vadd.f32 0.0, %v1199
      %v1201 = vpop.f32.mrb[0].mxu0
      %1202 = vdwg.mxu0
      %v1207 = vunpack.c.l.b16 %v1126
      %v1208 = vunpack.c.l.b16 %v1127
      %v1209 = vunpack.c.l.b16 %v1128
      %v1210 = vunpack.c.l.b16 %v1129
      %v1211 = vpack.c.b16 %v1208, %v1207
      %v1212 = vpack.c.b16 %v1210, %v1209
      %v1216 = vsel %vm1012, %v1130, 0
      %1218 = vmatprep.subr.bf16.mxu0 0
      %1219 = vmatpush1.bf16.msra.mxu0 %v1211
      %1220 = vmatprep.subr.bf16.mxu0 0
      %1221 = vmatpush1.bf16.msra.mxu0 %v1212
      %1222 = vmatprep.subr.bf16.mxu0 0
      %1223 = vmatpush1.bf16.msra.mxu0 0
      %1224 = vmatprep.subr.bf16.mxu0 0
      %1225 = vmatpush1.bf16.msra.mxu0 0
      %1226 = vmatprep.subr.bf16.mxu0 0
      %1227 = vmatpush1.bf16.msra.mxu0 0
      %1228 = vmatprep.subr.bf16.mxu0 0
      %1229 = vmatpush1.bf16.msra.mxu0 0
      %1230 = vmatprep.subr.bf16.mxu0 0
      %1231 = vmatpush1.bf16.msra.mxu0 0
      %1232 = vmatprep.subr.bf16.mxu0 0
      %1233 = vmatpush1.bf16.msra.mxu0 0
      %1234 = vmatprep.subr.bf16.mxu0 0
      %1235 = vmatpush1.bf16.msra.mxu0 0
      %1236 = vmatprep.subr.bf16.mxu0 0
      %1237 = vmatpush1.bf16.msra.mxu0 0
      %1238 = vmatprep.subr.bf16.mxu0 0
      %1239 = vmatpush1.bf16.msra.mxu0 0
      %1240 = vmatprep.subr.bf16.mxu0 0
      %1241 = vmatpush1.bf16.msra.mxu0 0
      %1242 = vmatprep.subr.bf16.mxu0 0
      %1243 = vmatpush1.bf16.msra.mxu0 0
      %1244 = vmatprep.subr.bf16.mxu0 0
      %1245 = vmatpush1.bf16.msra.mxu0 0
      %1246 = vmatprep.subr.bf16.mxu0 0
      %1247 = vmatpush1.bf16.msra.mxu0 0
      %1248 = vmatprep.subr.bf16.mxu0 0
      %1249 = vmatpush1.bf16.msra.mxu0 0
      %1250 = vmatprep.mubr.bf16.mxu0 0
      %1251 = vmatmul.mubr.bf16.gmra.mrb[0].mxu0 %v1216
      %v1252 = vpop.f32.mrb[0].mxu0
      %v1253 = vadd.f32 %v1197, %v1252
      %v1254 = vpop.f32.mrb[0].mxu0
      %v1255 = vpop.f32.mrb[0].mxu0
      %v1256 = vadd.f32 %v1200, %v1255
      %v1257 = vpop.f32.mrb[0].mxu0
      %1258 = vdwg.mxu0
      %v1259 = vrot.slane %v1115, 2
      %v1260 = vrot.slane %v1118, 2
      %v1261 = vsel %vm643, %v1259, %v1260
      %v1263 = vrot.slane %v1118, 6
      %v1264 = vrot.slane %v1119, 6
      %v1265 = vsel %vm1114, %v1263, %v1264
      %s1267 = scalar_lea.vmem %s2, 32
      %v1268 = vld [vmem:[%s1267] sm:$0xf]
      %v1269 = vld [vmem:[%s1267 + $0x4] sm:$0xf]
      %v1270 = vld [vmem:[%s1267 + $0x8] sm:$0xf]
      %v1271 = vld [vmem:[%s1267 + $0xc] sm:$0xf]
      %v1272 = vpack.c.bf16 %v1265, %v1261
      %v1277 = vunpack.c.l.b16 %v1268
      %v1278 = vunpack.c.l.b16 %v1269
      %v1279 = vunpack.c.l.b16 %v1270
      %v1280 = vunpack.c.l.b16 %v1271
      %v1281 = vpack.c.b16 %v1278, %v1277
      %v1282 = vpack.c.b16 %v1280, %v1279
      %v1286 = vsel %vm1012, %v1272, 0
      %1288 = vmatprep.subr.bf16.mxu0 0
      %1289 = vmatpush1.bf16.msra.mxu0 %v1281
      %1290 = vmatprep.subr.bf16.mxu0 0
      %1291 = vmatpush1.bf16.msra.mxu0 %v1282
      %1292 = vmatprep.subr.bf16.mxu0 0
      %1293 = vmatpush1.bf16.msra.mxu0 0
      %1294 = vmatprep.subr.bf16.mxu0 0
      %1295 = vmatpush1.bf16.msra.mxu0 0
      %1296 = vmatprep.subr.bf16.mxu0 0
      %1297 = vmatpush1.bf16.msra.mxu0 0
      %1298 = vmatprep.subr.bf16.mxu0 0
      %1299 = vmatpush1.bf16.msra.mxu0 0
      %1300 = vmatprep.subr.bf16.mxu0 0
      %1301 = vmatpush1.bf16.msra.mxu0 0
      %1302 = vmatprep.subr.bf16.mxu0 0
      %1303 = vmatpush1.bf16.msra.mxu0 0
      %1304 = vmatprep.subr.bf16.mxu0 0
      %1305 = vmatpush1.bf16.msra.mxu0 0
      %1306 = vmatprep.subr.bf16.mxu0 0
      %1307 = vmatpush1.bf16.msra.mxu0 0
      %1308 = vmatprep.subr.bf16.mxu0 0
      %1309 = vmatpush1.bf16.msra.mxu0 0
      %1310 = vmatprep.subr.bf16.mxu0 0
      %1311 = vmatpush1.bf16.msra.mxu0 0
      %1312 = vmatprep.subr.bf16.mxu0 0
      %1313 = vmatpush1.bf16.msra.mxu0 0
      %1314 = vmatprep.subr.bf16.mxu0 0
      %1315 = vmatpush1.bf16.msra.mxu0 0
      %1316 = vmatprep.subr.bf16.mxu0 0
      %1317 = vmatpush1.bf16.msra.mxu0 0
      %1318 = vmatprep.subr.bf16.mxu0 0
      %1319 = vmatpush1.bf16.msra.mxu0 0
      %1320 = vmatprep.mubr.bf16.mxu0 0
      %1321 = vmatmul.mubr.bf16.gmra.mrb[0].mxu0 %v1286
      %v1322 = vpop.f32.mrb[0].mxu0
      %v1323 = vadd.f32 0.0, %v1322
      %v1324 = vpop.f32.mrb[0].mxu0
      %v1325 = vpop.f32.mrb[0].mxu0
      %v1326 = vadd.f32 0.0, %v1325
      %v1327 = vpop.f32.mrb[0].mxu0
      %1328 = vdwg.mxu0
      %v1329 = vadd.f32 %v1253, %v1323
      %v1330 = vadd.f32 %v1256, %v1326
      %v1331 = vrot.slane %v1115, 3
      %v1332 = vrot.slane %v1118, 3
      %v1333 = vsel %vm752, %v1331, %v1332
      %vm1335 = vcmask 1040384
      %v1336 = vrot.slane %v1118, 7
      %v1337 = vrot.slane %v1119, 7
      %v1338 = vsel %vm1335, %v1336, %v1337
      %s1340 = scalar_lea.vmem %s2, 48
      %v1341 = vld [vmem:[%s1340] sm:$0xf]
      %v1342 = vld [vmem:[%s1340 + $0x4] sm:$0xf]
      %v1343 = vld [vmem:[%s1340 + $0x8] sm:$0xf]
      %v1344 = vld [vmem:[%s1340 + $0xc] sm:$0xf]
      %v1345 = vpack.c.bf16 %v1338, %v1333
      %v1350 = vunpack.c.l.b16 %v1341
      %v1351 = vunpack.c.l.b16 %v1342
      %v1352 = vunpack.c.l.b16 %v1343
      %v1353 = vunpack.c.l.b16 %v1344
      %v1354 = vpack.c.b16 %v1351, %v1350
      %v1355 = vpack.c.b16 %v1353, %v1352
      %v1359 = vsel %vm1012, %v1345, 0
      %1361 = vmatprep.subr.bf16.mxu0 0
      %1362 = vmatpush1.bf16.msra.mxu0 %v1354
      %1363 = vmatprep.subr.bf16.mxu0 0
      %1364 = vmatpush1.bf16.msra.mxu0 %v1355
      %1365 = vmatprep.subr.bf16.mxu0 0
      %1366 = vmatpush1.bf16.msra.mxu0 0
      %1367 = vmatprep.subr.bf16.mxu0 0
      %1368 = vmatpush1.bf16.msra.mxu0 0
      %1369 = vmatprep.subr.bf16.mxu0 0
      %1370 = vmatpush1.bf16.msra.mxu0 0
      %1371 = vmatprep.subr.bf16.mxu0 0
      %1372 = vmatpush1.bf16.msra.mxu0 0
      %1373 = vmatprep.subr.bf16.mxu0 0
      %1374 = vmatpush1.bf16.msra.mxu0 0
      %1375 = vmatprep.subr.bf16.mxu0 0
      %1376 = vmatpush1.bf16.msra.mxu0 0
      %1377 = vmatprep.subr.bf16.mxu0 0
      %1378 = vmatpush1.bf16.msra.mxu0 0
      %1379 = vmatprep.subr.bf16.mxu0 0
      %1380 = vmatpush1.bf16.msra.mxu0 0
      %1381 = vmatprep.subr.bf16.mxu0 0
      %1382 = vmatpush1.bf16.msra.mxu0 0
      %1383 = vmatprep.subr.bf16.mxu0 0
      %1384 = vmatpush1.bf16.msra.mxu0 0
      %1385 = vmatprep.subr.bf16.mxu0 0
      %1386 = vmatpush1.bf16.msra.mxu0 0
      %1387 = vmatprep.subr.bf16.mxu0 0
      %1388 = vmatpush1.bf16.msra.mxu0 0
      %1389 = vmatprep.subr.bf16.mxu0 0
      %1390 = vmatpush1.bf16.msra.mxu0 0
      %1391 = vmatprep.subr.bf16.mxu0 0
      %1392 = vmatpush1.bf16.msra.mxu0 0
      %1393 = vmatprep.mubr.bf16.mxu0 0
      %1394 = vmatmul.mubr.bf16.gmra.mrb[0].mxu0 %v1359
      %v1395 = vpop.f32.mrb[0].mxu0
      %v1396 = vadd.f32 0.0, %v1395
      %v1397 = vpop.f32.mrb[0].mxu0
      %v1398 = vpop.f32.mrb[0].mxu0
      %v1399 = vadd.f32 0.0, %v1398
      %v1400 = vpop.f32.mrb[0].mxu0
      %1401 = vdwg.mxu0
      %v1402 = vadd.f32 %v1329, %v1396
      %v1403 = vadd.f32 %v1330, %v1399
      %v1404 = vrot.slane %v1115, 4
      %v1405 = vsel %vm861, %v1404, %v1122
      %s1407 = scalar_lea.vmem %s2, 64
      %v1408 = vld [vmem:[%s1407] sm:$0xf]
      %v1409 = vld [vmem:[%s1407 + $0x4] sm:$0xf]
      %v1410 = vld [vmem:[%s1407 + $0x8] sm:$0xf]
      %v1411 = vld [vmem:[%s1407 + $0xc] sm:$0xf]
      %v1412 = vpack.c.bf16 %v1119, %v1405
      %v1417 = vunpack.c.l.b16 %v1408
      %v1418 = vunpack.c.l.b16 %v1409
      %v1419 = vunpack.c.l.b16 %v1410
      %v1420 = vunpack.c.l.b16 %v1411
      %v1421 = vpack.c.b16 %v1418, %v1417
      %v1422 = vpack.c.b16 %v1420, %v1419
      %v1426 = vsel %vm1012, %v1412, 0
      %1428 = vmatprep.subr.bf16.mxu0 0
      %1429 = vmatpush1.bf16.msra.mxu0 %v1421
      %1430 = vmatprep.subr.bf16.mxu0 0
      %1431 = vmatpush1.bf16.msra.mxu0 %v1422
      %1432 = vmatprep.subr.bf16.mxu0 0
      %1433 = vmatpush1.bf16.msra.mxu0 0
      %1434 = vmatprep.subr.bf16.mxu0 0
      %1435 = vmatpush1.bf16.msra.mxu0 0
      %1436 = vmatprep.subr.bf16.mxu0 0
      %1437 = vmatpush1.bf16.msra.mxu0 0
      %1438 = vmatprep.subr.bf16.mxu0 0
      %1439 = vmatpush1.bf16.msra.mxu0 0
      %1440 = vmatprep.subr.bf16.mxu0 0
      %1441 = vmatpush1.bf16.msra.mxu0 0
      %1442 = vmatprep.subr.bf16.mxu0 0
      %1443 = vmatpush1.bf16.msra.mxu0 0
      %1444 = vmatprep.subr.bf16.mxu0 0
      %1445 = vmatpush1.bf16.msra.mxu0 0
      %1446 = vmatprep.subr.bf16.mxu0 0
      %1447 = vmatpush1.bf16.msra.mxu0 0
      %1448 = vmatprep.subr.bf16.mxu0 0
      %1449 = vmatpush1.bf16.msra.mxu0 0
      %1450 = vmatprep.subr.bf16.mxu0 0
      %1451 = vmatpush1.bf16.msra.mxu0 0
      %1452 = vmatprep.subr.bf16.mxu0 0
      %1453 = vmatpush1.bf16.msra.mxu0 0
      %1454 = vmatprep.subr.bf16.mxu0 0
      %1455 = vmatpush1.bf16.msra.mxu0 0
      %1456 = vmatprep.subr.bf16.mxu0 0
      %1457 = vmatpush1.bf16.msra.mxu0 0
      %1458 = vmatprep.subr.bf16.mxu0 0
      %1459 = vmatpush1.bf16.msra.mxu0 0
      %1460 = vmatprep.mubr.bf16.mxu0 0
      %1461 = vmatmul.mubr.bf16.gmra.mrb[0].mxu0 %v1426
      %v1462 = vpop.f32.mrb[0].mxu0
      %v1463 = vadd.f32 0.0, %v1462
      %v1464 = vpop.f32.mrb[0].mxu0
      %v1465 = vpop.f32.mrb[0].mxu0
      %v1466 = vadd.f32 0.0, %v1465
      %v1467 = vpop.f32.mrb[0].mxu0
      %1468 = vdwg.mxu0
      %v1469 = vadd.f32 %v1402, %v1463
      %v1470 = vadd.f32 %v1403, %v1466
      %v1471 = vld [vmem:[%s5] sm:$0x1]
      %v1473 = vlaneseq
      %v1474 = vshrl.u32 %v1473, 7
      %v1475 = vsub.s32 0, %v1474
      %v1476 = vrot.slane %v1471, %v1475
      %v1478 = vadd.f32 %v1469, %v1476
      %v1479 = vadd.f32 %v1470, %v1476
      %v1480 = vmax.f32 %v1478, 0.0
      %v1481 = vmax.f32 %v1479, 0.0
      %1484 = vrot.lane.b32.xlu0 %v1480, 112
      %v1485 = vpop.permute.xlu0 %1484
      %1486 = vrot.lane.b32.xlu0 %v1481, 112
      %v1487 = vpop.permute.xlu0 %1486
      %v1490 = vmax.f32 %v1480, %v1485
      %v1491 = vmax.f32 %v1481, %v1487
      %v1492 = vpack.c.bf16 %v1491, %v1490
      %vm1493 = vcmask 130048
      %v1495 = vsel %vm1493, %v432, 0
      %1497 = vmatprep.subr.bf16.mxu0 0
      %1498 = vmatpush1.bf16.msra.mxu0 %v1492
      %1499 = vmatprep.subr.bf16.mxu0 0
      %1500 = vmatpush1.bf16.msra.mxu0 0
      %1501 = vmatprep.subr.bf16.mxu0 0
      %1502 = vmatpush1.bf16.msra.mxu0 0
      %1503 = vmatprep.subr.bf16.mxu0 0
      %1504 = vmatpush1.bf16.msra.mxu0 0
      %1505 = vmatprep.subr.bf16.mxu0 0
      %1506 = vmatpush1.bf16.msra.mxu0 0
      %1507 = vmatprep.subr.bf16.mxu0 0
      %1508 = vmatpush1.bf16.msra.mxu0 0
      %1509 = vmatprep.subr.bf16.mxu0 0
      %1510 = vmatpush1.bf16.msra.mxu0 0
      %1511 = vmatprep.subr.bf16.mxu0 0
      %1512 = vmatpush1.bf16.msra.mxu0 0
      %1513 = vmatprep.subr.bf16.mxu0 0
      %1514 = vmatpush1.bf16.msra.mxu0 0
      %1515 = vmatprep.subr.bf16.mxu0 0
      %1516 = vmatpush1.bf16.msra.mxu0 0
      %1517 = vmatprep.subr.bf16.mxu0 0
      %1518 = vmatpush1.bf16.msra.mxu0 0
      %1519 = vmatprep.subr.bf16.mxu0 0
      %1520 = vmatpush1.bf16.msra.mxu0 0
      %1521 = vmatprep.subr.bf16.mxu0 0
      %1522 = vmatpush1.bf16.msra.mxu0 0
      %1523 = vmatprep.subr.bf16.mxu0 0
      %1524 = vmatpush1.bf16.msra.mxu0 0
      %1525 = vmatprep.subr.bf16.mxu0 0
      %1526 = vmatpush1.bf16.msra.mxu0 0
      %1527 = vmatprep.subr.bf16.mxu0 0
      %1528 = vmatpush1.bf16.msra.mxu0 0
      %1529 = vmatprep.mubr.bf16.mxu0 0
      %1530 = vmatmul.mubr.bf16.gmra.mrb[0].mxu0 %v1495
      %v1531 = vpop.f32.mrb[0].mxu0
      %v1532 = vadd.f32 0.0, %v1531
      %v1533 = vpop.f32.mrb[0].mxu0
      %v1534 = vpop.f32.mrb[0].mxu0
      %v1535 = vpop.f32.mrb[0].mxu0
      %1536 = vdwg.mxu0
      %v1538 = vsel %vm1493, %v434, 0
      %1540 = vmatprep.subr.bf16.mxu0 0
      %1541 = vmatpush1.bf16.msra.mxu0 %v1492
      %1542 = vmatprep.subr.bf16.mxu0 0
      %1543 = vmatpush1.bf16.msra.mxu0 0
      %1544 = vmatprep.subr.bf16.mxu0 0
      %1545 = vmatpush1.bf16.msra.mxu0 0
      %1546 = vmatprep.subr.bf16.mxu0 0
      %1547 = vmatpush1.bf16.msra.mxu0 0
      %1548 = vmatprep.subr.bf16.mxu0 0
      %1549 = vmatpush1.bf16.msra.mxu0 0
      %1550 = vmatprep.subr.bf16.mxu0 0
      %1551 = vmatpush1.bf16.msra.mxu0 0
      %1552 = vmatprep.subr.bf16.mxu0 0
      %1553 = vmatpush1.bf16.msra.mxu0 0
      %1554 = vmatprep.subr.bf16.mxu0 0
      %1555 = vmatpush1.bf16.msra.mxu0 0
      %1556 = vmatprep.subr.bf16.mxu0 0
      %1557 = vmatpush1.bf16.msra.mxu0 0
      %1558 = vmatprep.subr.bf16.mxu0 0
      %1559 = vmatpush1.bf16.msra.mxu0 0
      %1560 = vmatprep.subr.bf16.mxu0 0
      %1561 = vmatpush1.bf16.msra.mxu0 0
      %1562 = vmatprep.subr.bf16.mxu0 0
      %1563 = vmatpush1.bf16.msra.mxu0 0
      %1564 = vmatprep.subr.bf16.mxu0 0
      %1565 = vmatpush1.bf16.msra.mxu0 0
      %1566 = vmatprep.subr.bf16.mxu0 0
      %1567 = vmatpush1.bf16.msra.mxu0 0
      %1568 = vmatprep.subr.bf16.mxu0 0
      %1569 = vmatpush1.bf16.msra.mxu0 0
      %1570 = vmatprep.subr.bf16.mxu0 0
      %1571 = vmatpush1.bf16.msra.mxu0 0
      %1572 = vmatprep.mubr.bf16.mxu0 0
      %1573 = vmatmul.mubr.bf16.gmra.mrb[0].mxu0 %v1538
      %v1574 = vpop.f32.mrb[0].mxu0
      %v1575 = vadd.f32 0.0, %v1574
      %v1576 = vpop.f32.mrb[0].mxu0
      %v1577 = vpop.f32.mrb[0].mxu0
      %v1578 = vpop.f32.mrb[0].mxu0
      %1579 = vdwg.mxu0
      %v1580 = vmax.f32 %v1532, %v1575
      %v1581 = vld [vmem:[#allocation2] sm:$0xff]
      %v1582 = vld [vmem:[#allocation3] sm:$0xff]
      %1584 = vrot.lane.b32.xlu0 %v1581, 16
      %v1585 = vpop.permute.xlu0 %1584
      %v1587 = vsel %vm1493, %v1580, %v1585
      %v1589 = vrot.slane %v1587, 6
      %v1591 = vrot.slane %v1587, 2
      %v1593 = vsel %vm1114, 0.0, %v1589
      %v1594 = vsel %vm643, %v1593, 0.0
      %v1595 = vsel %vm1114, 0.0, %v1591
      %v1596 = vsel %vm643, %v1595, 0.0
      %v1598 = vrot.slane %v1596, 4
      %v1600 = vsel %vm861, %v1594, %v1598
      %v1601 = vld [vmem:[%s3] sm:$0xf]
      %v1602 = vld [vmem:[%s3 + $0x4] sm:$0xf]
      %v1603 = vld [vmem:[%s3 + $0x8] sm:$0xf]
      %v1604 = vld [vmem:[%s3 + $0xc] sm:$0xf]
      %v1605 = vld [vmem:[%s3 + $0x10] sm:$0xf]
      %v1606 = vld [vmem:[%s3 + $0x14] sm:$0xf]
      %v1607 = vpack.c.bf16 %v1600, %v1600
      %v1609 = vrot.slane %v1594, 1
      %v1611 = vrot.slane %v1596, 5
      %v1613 = vsel %vm861, %v1609, %v1611
      %s1614 = scalar_lea.vmem %s3, 24
      %v1615 = vld [vmem:[%s1614] sm:$0xf]
      %v1616 = vld [vmem:[%s1614 + $0x4] sm:$0xf]
      %v1617 = vld [vmem:[%s1614 + $0x8] sm:$0xf]
      %v1618 = vld [vmem:[%s1614 + $0xc] sm:$0xf]
      %v1619 = vld [vmem:[%s1614 + $0x10] sm:$0xf]
      %v1620 = vld [vmem:[%s1614 + $0x14] sm:$0xf]
      %v1621 = vpack.c.bf16 %v1613, %v1613
      %v1628 = vunpack.c.l.b16 %v1615
      %v1629 = vunpack.c.l.b16 %v1616
      %v1630 = vunpack.c.l.b16 %v1617
      %v1631 = vunpack.c.l.b16 %v1618
      %v1632 = vunpack.c.l.b16 %v1619
      %v1633 = vunpack.c.l.b16 %v1620
      %v1634 = vpack.c.b16 %v1629, %v1628
      %v1635 = vpack.c.b16 %v1631, %v1630
      %v1636 = vpack.c.b16 %v1633, %v1632
      %vm1640 = vcmask 392192
      %v1642 = vsel %vm1640, %v1621, 0
      %1644 = vmatprep.subr.bf16.mxu0 0
      %1645 = vmatpush1.bf16.msra.mxu0 %v1634
      %1646 = vmatprep.subr.bf16.mxu0 0
      %1647 = vmatpush1.bf16.msra.mxu0 %v1635
      %1648 = vmatprep.subr.bf16.mxu0 0
      %1649 = vmatpush1.bf16.msra.mxu0 %v1636
      %1650 = vmatprep.subr.bf16.mxu0 0
      %1651 = vmatpush1.bf16.msra.mxu0 0
      %1652 = vmatprep.subr.bf16.mxu0 0
      %1653 = vmatpush1.bf16.msra.mxu0 0
      %1654 = vmatprep.subr.bf16.mxu0 0
      %1655 = vmatpush1.bf16.msra.mxu0 0
      %1656 = vmatprep.subr.bf16.mxu0 0
      %1657 = vmatpush1.bf16.msra.mxu0 0
      %1658 = vmatprep.subr.bf16.mxu0 0
      %1659 = vmatpush1.bf16.msra.mxu0 0
      %1660 = vmatprep.subr.bf16.mxu0 0
      %1661 = vmatpush1.bf16.msra.mxu0 0
      %1662 = vmatprep.subr.bf16.mxu0 0
      %1663 = vmatpush1.bf16.msra.mxu0 0
      %1664 = vmatprep.subr.bf16.mxu0 0
      %1665 = vmatpush1.bf16.msra.mxu0 0
      %1666 = vmatprep.subr.bf16.mxu0 0
      %1667 = vmatpush1.bf16.msra.mxu0 0
      %1668 = vmatprep.subr.bf16.mxu0 0
      %1669 = vmatpush1.bf16.msra.mxu0 0
      %1670 = vmatprep.subr.bf16.mxu0 0
      %1671 = vmatpush1.bf16.msra.mxu0 0
      %1672 = vmatprep.subr.bf16.mxu0 0
      %1673 = vmatpush1.bf16.msra.mxu0 0
      %1674 = vmatprep.subr.bf16.mxu0 0
      %1675 = vmatpush1.bf16.msra.mxu0 0
      %1676 = vmatprep.mubr.bf16.mxu0 0
      %1677 = vmatmul.mubr.bf16.gmra.mrb[0].mxu0 %v1642
      %v1678 = vpop.f32.mrb[0].mxu0
      %v1679 = vadd.f32 0.0, %v1678
      %v1680 = vpop.f32.mrb[0].mxu0
      %v1681 = vpop.f32.mrb[0].mxu0
      %v1682 = vpop.f32.mrb[0].mxu0
      %1683 = vdwg.mxu0
      %v1690 = vunpack.c.l.b16 %v1601
      %v1691 = vunpack.c.l.b16 %v1602
      %v1692 = vunpack.c.l.b16 %v1603
      %v1693 = vunpack.c.l.b16 %v1604
      %v1694 = vunpack.c.l.b16 %v1605
      %v1695 = vunpack.c.l.b16 %v1606
      %v1696 = vpack.c.b16 %v1691, %v1690
      %v1697 = vpack.c.b16 %v1693, %v1692
      %v1698 = vpack.c.b16 %v1695, %v1694
      %v1703 = vsel %vm1640, %v1607, 0
      %1705 = vmatprep.subr.bf16.mxu0 0
      %1706 = vmatpush1.bf16.msra.mxu0 %v1696
      %1707 = vmatprep.subr.bf16.mxu0 0
      %1708 = vmatpush1.bf16.msra.mxu0 %v1697
      %1709 = vmatprep.subr.bf16.mxu0 0
      %1710 = vmatpush1.bf16.msra.mxu0 %v1698
      %1711 = vmatprep.subr.bf16.mxu0 0
      %1712 = vmatpush1.bf16.msra.mxu0 0
      %1713 = vmatprep.subr.bf16.mxu0 0
      %1714 = vmatpush1.bf16.msra.mxu0 0
      %1715 = vmatprep.subr.bf16.mxu0 0
      %1716 = vmatpush1.bf16.msra.mxu0 0
      %1717 = vmatprep.subr.bf16.mxu0 0
      %1718 = vmatpush1.bf16.msra.mxu0 0
      %1719 = vmatprep.subr.bf16.mxu0 0
      %1720 = vmatpush1.bf16.msra.mxu0 0
      %1721 = vmatprep.subr.bf16.mxu0 0
      %1722 = vmatpush1.bf16.msra.mxu0 0
      %1723 = vmatprep.subr.bf16.mxu0 0
      %1724 = vmatpush1.bf16.msra.mxu0 0
      %1725 = vmatprep.subr.bf16.mxu0 0
      %1726 = vmatpush1.bf16.msra.mxu0 0
      %1727 = vmatprep.subr.bf16.mxu0 0
      %1728 = vmatpush1.bf16.msra.mxu0 0
      %1729 = vmatprep.subr.bf16.mxu0 0
      %1730 = vmatpush1.bf16.msra.mxu0 0
      %1731 = vmatprep.subr.bf16.mxu0 0
      %1732 = vmatpush1.bf16.msra.mxu0 0
      %1733 = vmatprep.subr.bf16.mxu0 0
      %1734 = vmatpush1.bf16.msra.mxu0 0
      %1735 = vmatprep.subr.bf16.mxu0 0
      %1736 = vmatpush1.bf16.msra.mxu0 0
      %1737 = vmatprep.mubr.bf16.mxu0 0
      %1738 = vmatmul.mubr.bf16.gmra.mrb[0].mxu0 %v1703
      %v1739 = vpop.f32.mrb[0].mxu0
      %v1740 = vadd.f32 %v1679, %v1739
      %v1741 = vpop.f32.mrb[0].mxu0
      %v1742 = vpop.f32.mrb[0].mxu0
      %v1743 = vpop.f32.mrb[0].mxu0
      %1744 = vdwg.mxu0
      %v1745 = vrot.slane %v1594, 2
      %v1747 = vrot.slane %v1596, 6
      %v1749 = vsel %vm861, %v1745, %v1747
      %s1750 = scalar_lea.vmem %s3, 48
      %v1751 = vld [vmem:[%s1750] sm:$0xf]
      %v1752 = vld [vmem:[%s1750 + $0x4] sm:$0xf]
      %v1753 = vld [vmem:[%s1750 + $0x8] sm:$0xf]
      %v1754 = vld [vmem:[%s1750 + $0xc] sm:$0xf]
      %v1755 = vld [vmem:[%s1750 + $0x10] sm:$0xf]
      %v1756 = vld [vmem:[%s1750 + $0x14] sm:$0xf]
      %v1757 = vpack.c.bf16 %v1749, %v1749
      %v1764 = vunpack.c.l.b16 %v1751
      %v1765 = vunpack.c.l.b16 %v1752
      %v1766 = vunpack.c.l.b16 %v1753
      %v1767 = vunpack.c.l.b16 %v1754
      %v1768 = vunpack.c.l.b16 %v1755
      %v1769 = vunpack.c.l.b16 %v1756
      %v1770 = vpack.c.b16 %v1765, %v1764
      %v1771 = vpack.c.b16 %v1767, %v1766
      %v1772 = vpack.c.b16 %v1769, %v1768
      %v1777 = vsel %vm1640, %v1757, 0
      %1779 = vmatprep.subr.bf16.mxu0 0
      %1780 = vmatpush1.bf16.msra.mxu0 %v1770
      %1781 = vmatprep.subr.bf16.mxu0 0
      %1782 = vmatpush1.bf16.msra.mxu0 %v1771
      %1783 = vmatprep.subr.bf16.mxu0 0
      %1784 = vmatpush1.bf16.msra.mxu0 %v1772
      %1785 = vmatprep.subr.bf16.mxu0 0
      %1786 = vmatpush1.bf16.msra.mxu0 0
      %1787 = vmatprep.subr.bf16.mxu0 0
      %1788 = vmatpush1.bf16.msra.mxu0 0
      %1789 = vmatprep.subr.bf16.mxu0 0
      %1790 = vmatpush1.bf16.msra.mxu0 0
      %1791 = vmatprep.subr.bf16.mxu0 0
      %1792 = vmatpush1.bf16.msra.mxu0 0
      %1793 = vmatprep.subr.bf16.mxu0 0
      %1794 = vmatpush1.bf16.msra.mxu0 0
      %1795 = vmatprep.subr.bf16.mxu0 0
      %1796 = vmatpush1.bf16.msra.mxu0 0
      %1797 = vmatprep.subr.bf16.mxu0 0
      %1798 = vmatpush1.bf16.msra.mxu0 0
      %1799 = vmatprep.subr.bf16.mxu0 0
      %1800 = vmatpush1.bf16.msra.mxu0 0
      %1801 = vmatprep.subr.bf16.mxu0 0
      %1802 = vmatpush1.bf16.msra.mxu0 0
      %1803 = vmatprep.subr.bf16.mxu0 0
      %1804 = vmatpush1.bf16.msra.mxu0 0
      %1805 = vmatprep.subr.bf16.mxu0 0
      %1806 = vmatpush1.bf16.msra.mxu0 0
      %1807 = vmatprep.subr.bf16.mxu0 0
      %1808 = vmatpush1.bf16.msra.mxu0 0
      %1809 = vmatprep.subr.bf16.mxu0 0
      %1810 = vmatpush1.bf16.msra.mxu0 0
      %1811 = vmatprep.mubr.bf16.mxu0 0
      %1812 = vmatmul.mubr.bf16.gmra.mrb[0].mxu0 %v1777
      %v1813 = vpop.f32.mrb[0].mxu0
      %v1814 = vadd.f32 0.0, %v1813
      %v1815 = vpop.f32.mrb[0].mxu0
      %v1816 = vpop.f32.mrb[0].mxu0
      %v1817 = vpop.f32.mrb[0].mxu0
      %1818 = vdwg.mxu0
      %v1819 = vadd.f32 %v1740, %v1814
      %v1820 = vrot.slane %v1594, 3
      %v1822 = vrot.slane %v1596, 7
      %v1824 = vsel %vm861, %v1820, %v1822
      %s1825 = scalar_lea.vmem %s3, 72
      %v1826 = vld [vmem:[%s1825] sm:$0xf]
      %v1827 = vld [vmem:[%s1825 + $0x4] sm:$0xf]
      %v1828 = vld [vmem:[%s1825 + $0x8] sm:$0xf]
      %v1829 = vld [vmem:[%s1825 + $0xc] sm:$0xf]
      %v1830 = vld [vmem:[%s1825 + $0x10] sm:$0xf]
      %v1831 = vld [vmem:[%s1825 + $0x14] sm:$0xf]
      %v1832 = vpack.c.bf16 %v1824, %v1824
      %v1839 = vunpack.c.l.b16 %v1826
      %v1840 = vunpack.c.l.b16 %v1827
      %v1841 = vunpack.c.l.b16 %v1828
      %v1842 = vunpack.c.l.b16 %v1829
      %v1843 = vunpack.c.l.b16 %v1830
      %v1844 = vunpack.c.l.b16 %v1831
      %v1845 = vpack.c.b16 %v1840, %v1839
      %v1846 = vpack.c.b16 %v1842, %v1841
      %v1847 = vpack.c.b16 %v1844, %v1843
      %v1852 = vsel %vm1640, %v1832, 0
      %1854 = vmatprep.subr.bf16.mxu0 0
      %1855 = vmatpush1.bf16.msra.mxu0 %v1845
      %1856 = vmatprep.subr.bf16.mxu0 0
      %1857 = vmatpush1.bf16.msra.mxu0 %v1846
      %1858 = vmatprep.subr.bf16.mxu0 0
      %1859 = vmatpush1.bf16.msra.mxu0 %v1847
      %1860 = vmatprep.subr.bf16.mxu0 0
      %1861 = vmatpush1.bf16.msra.mxu0 0
      %1862 = vmatprep.subr.bf16.mxu0 0
      %1863 = vmatpush1.bf16.msra.mxu0 0
      %1864 = vmatprep.subr.bf16.mxu0 0
      %1865 = vmatpush1.bf16.msra.mxu0 0
      %1866 = vmatprep.subr.bf16.mxu0 0
      %1867 = vmatpush1.bf16.msra.mxu0 0
      %1868 = vmatprep.subr.bf16.mxu0 0
      %1869 = vmatpush1.bf16.msra.mxu0 0
      %1870 = vmatprep.subr.bf16.mxu0 0
      %1871 = vmatpush1.bf16.msra.mxu0 0
      %1872 = vmatprep.subr.bf16.mxu0 0
      %1873 = vmatpush1.bf16.msra.mxu0 0
      %1874 = vmatprep.subr.bf16.mxu0 0
      %1875 = vmatpush1.bf16.msra.mxu0 0
      %1876 = vmatprep.subr.bf16.mxu0 0
      %1877 = vmatpush1.bf16.msra.mxu0 0
      %1878 = vmatprep.subr.bf16.mxu0 0
      %1879 = vmatpush1.bf16.msra.mxu0 0
      %1880 = vmatprep.subr.bf16.mxu0 0
      %1881 = vmatpush1.bf16.msra.mxu0 0
      %1882 = vmatprep.subr.bf16.mxu0 0
      %1883 = vmatpush1.bf16.msra.mxu0 0
      %1884 = vmatprep.subr.bf16.mxu0 0
      %1885 = vmatpush1.bf16.msra.mxu0 0
      %1886 = vmatprep.mubr.bf16.mxu0 0
      %1887 = vmatmul.mubr.bf16.gmra.mrb[0].mxu0 %v1852
      %v1888 = vpop.f32.mrb[0].mxu0
      %v1889 = vadd.f32 0.0, %v1888
      %v1890 = vpop.f32.mrb[0].mxu0
      %v1891 = vpop.f32.mrb[0].mxu0
      %v1892 = vpop.f32.mrb[0].mxu0
      %1893 = vdwg.mxu0
      %v1894 = vadd.f32 %v1819, %v1889
      %v1895 = vrot.slane %v1594, 4
      %v1897 = vsel %vm861, %v1895, %v1596
      %s1898 = scalar_lea.vmem %s3, 96
      %v1899 = vld [vmem:[%s1898] sm:$0xf]
      %v1900 = vld [vmem:[%s1898 + $0x4] sm:$0xf]
      %v1901 = vld [vmem:[%s1898 + $0x8] sm:$0xf]
      %v1902 = vld [vmem:[%s1898 + $0xc] sm:$0xf]
      %v1903 = vld [vmem:[%s1898 + $0x10] sm:$0xf]
      %v1904 = vld [vmem:[%s1898 + $0x14] sm:$0xf]
      %v1905 = vpack.c.bf16 %v1897, %v1897
      %v1912 = vunpack.c.l.b16 %v1899
      %v1913 = vunpack.c.l.b16 %v1900
      %v1914 = vunpack.c.l.b16 %v1901
      %v1915 = vunpack.c.l.b16 %v1902
      %v1916 = vunpack.c.l.b16 %v1903
      %v1917 = vunpack.c.l.b16 %v1904
      %v1918 = vpack.c.b16 %v1913, %v1912
      %v1919 = vpack.c.b16 %v1915, %v1914
      %v1920 = vpack.c.b16 %v1917, %v1916
      %v1925 = vsel %vm1640, %v1905, 0
      %1927 = vmatprep.subr.bf16.mxu0 0
      %1928 = vmatpush1.bf16.msra.mxu0 %v1918
      %1929 = vmatprep.subr.bf16.mxu0 0
      %1930 = vmatpush1.bf16.msra.mxu0 %v1919
      %1931 = vmatprep.subr.bf16.mxu0 0
      %1932 = vmatpush1.bf16.msra.mxu0 %v1920
      %1933 = vmatprep.subr.bf16.mxu0 0
      %1934 = vmatpush1.bf16.msra.mxu0 0
      %1935 = vmatprep.subr.bf16.mxu0 0
      %1936 = vmatpush1.bf16.msra.mxu0 0
      %1937 = vmatprep.subr.bf16.mxu0 0
      %1938 = vmatpush1.bf16.msra.mxu0 0
      %1939 = vmatprep.subr.bf16.mxu0 0
      %1940 = vmatpush1.bf16.msra.mxu0 0
      %1941 = vmatprep.subr.bf16.mxu0 0
      %1942 = vmatpush1.bf16.msra.mxu0 0
      %1943 = vmatprep.subr.bf16.mxu0 0
      %1944 = vmatpush1.bf16.msra.mxu0 0
      %1945 = vmatprep.subr.bf16.mxu0 0
      %1946 = vmatpush1.bf16.msra.mxu0 0
      %1947 = vmatprep.subr.bf16.mxu0 0
      %1948 = vmatpush1.bf16.msra.mxu0 0
      %1949 = vmatprep.subr.bf16.mxu0 0
      %1950 = vmatpush1.bf16.msra.mxu0 0
      %1951 = vmatprep.subr.bf16.mxu0 0
      %1952 = vmatpush1.bf16.msra.mxu0 0
      %1953 = vmatprep.subr.bf16.mxu0 0
      %1954 = vmatpush1.bf16.msra.mxu0 0
      %1955 = vmatprep.subr.bf16.mxu0 0
      %1956 = vmatpush1.bf16.msra.mxu0 0
      %1957 = vmatprep.subr.bf16.mxu0 0
      %1958 = vmatpush1.bf16.msra.mxu0 0
      %1959 = vmatprep.mubr.bf16.mxu0 0
      %1960 = vmatmul.mubr.bf16.gmra.mrb[0].mxu0 %v1925
      %v1961 = vpop.f32.mrb[0].mxu0
      %v1962 = vadd.f32 0.0, %v1961
      %v1963 = vpop.f32.mrb[0].mxu0
      %v1964 = vpop.f32.mrb[0].mxu0
      %v1965 = vpop.f32.mrb[0].mxu0
      %1966 = vdwg.mxu0
      %v1967 = vadd.f32 %v1894, %v1962
      %v1968 = vld [vmem:[%s6] sm:$0x1]
      %v1970 = vlaneseq
      %v1971 = vshrl.u32 %v1970, 7
      %v1972 = vsub.s32 0, %v1971
      %v1973 = vrot.slane %v1968, %v1972
      %v1975 = vadd.f32 %v1967, %v1973
      %v1976 = vld [vmem:[%s9] sm:$0xff]
      %v1977 = vmul.f32 %v1976, %v1582
      %v1978 = vadd.f32 %v1975, %v1977
      %v1979 = vxor.u32 %v1978, 2147483648
      %v1980 = vmul.f32 %v1979, 1.442695
      %v1981 = vpow.pop %v1980
      %v1982 = vadd.f32 %v1981, 1.0
      %v1983 = vrcp.pop %v1982
      %v1984 = vmul.f32 1.0, %v1983
      %v1985 = vld [vmem:[%s10] sm:$0xff]
      %v1986 = vmul.f32 %v1985, %v1582
      %1988 = vrot.lane.b32.xlu0 %v1986, 32
      %v1989 = vpop.permute.xlu0 %1988
      %v1991 = vadd.f32 %v1975, %v1989
      %v1992 = vxor.u32 %v1991, 2147483648
      %v1993 = vmul.f32 %v1992, 1.442695
      %v1994 = vpow.pop %v1993
      %v1995 = vadd.f32 %v1994, 1.0
      %v1996 = vrcp.pop %v1995
      %v1997 = vmul.f32 1.0, %v1996
      %1999 = vrot.lane.b32.xlu0 %v1582, 32
      %v2000 = vpop.permute.xlu0 %1999
      %v2002 = vmul.f32 %v1997, %v2000
      %v2003 = vtanh.pop %v1975
      %2005 = vrot.lane.b32.xlu0 %v2003, 64
      %v2006 = vpop.permute.xlu0 %2005
      %v2008 = vmul.f32 %v1984, %v2006
      %2010 = vrot.lane.b32.xlu0 %v2008, 32
      %v2011 = vpop.permute.xlu0 %2010
      %v2013 = vadd.f32 %v2002, %v2011
      %v2014 = vld [vmem:[%s11] sm:$0xff]
      %2016 = vrot.lane.b32.xlu0 %v2013, 96
      %v2017 = vpop.permute.xlu0 %2016
      %v2019 = vmul.f32 %v2014, %v2017
      %2021 = vrot.lane.b32.xlu0 %v2019, 96
      %v2022 = vpop.permute.xlu0 %2021
      %v2024 = vadd.f32 %v1975, %v2022
      %v2025 = vxor.u32 %v2024, 2147483648
      %v2026 = vmul.f32 %v2025, 1.442695
      %v2027 = vpow.pop %v2026
      %v2028 = vadd.f32 %v2027, 1.0
      %v2029 = vrcp.pop %v2028
      %v2030 = vmul.f32 1.0, %v2029
      %v2031 = vtanh.pop %v2013
      %2033 = vrot.lane.b32.xlu0 %v2031, 64
      %v2034 = vpop.permute.xlu0 %2033
      %v2036 = vmul.f32 %v2030, %v2034
      %2038 = vrot.lane.b32.xlu0 %v2036, 32
      %v2039 = vpop.permute.xlu0 %2038
      %2041 = vst.msk [vmem:[#allocation2] sm:$0xff] %vm1012, %v2039
      %2042 = vst.msk [vmem:[#allocation3] sm:$0xff] %vm1012, %v2017
      %2043 = vst.msk [vmem:[%s12] sm:$0xff] %vm1012, %v2039
      %2044 = vst.msk [vmem:[%s13] sm:$0xff] %vm1012, %v2017
      // Predicated region
      $region73: #{encoder_obs_forward.1} parent=67 // pred_check
        %p2045 = pneg %p295
      $region74: #{encoder_obs_forward.1} parent=67 // pred_check_branch
        %2047 = sbr.rel (%p2045) target = $region76
      $region75: #{encoder_obs_forward.1} parent=67 // pred_region
        _
      $region76: #{encoder_obs_forward.1} parent=67 // pred_fallthru
        _
      // Predicated region
      $region77: #{encoder_obs_forward.1} parent=67 // pred_check
        %p2048 = pneg %p316
      $region78: #{encoder_obs_forward.1} parent=67 // pred_check_branch
        %2050 = sbr.rel (%p2048) target = $region80
      $region79: #{encoder_obs_forward.1} parent=67 // pred_region
        _
      $region80: #{encoder_obs_forward.1} parent=67 // pred_fallthru
        _
      // Predicated region
      $region81: #{encoder_obs_forward.1} parent=67 // pred_check
        %p2051 = pneg %p295
      $region82: #{encoder_obs_forward.1} parent=67 // pred_check_branch
        %2053 = sbr.rel (%p2051) target = $region84
      $region83: #{encoder_obs_forward.1} parent=67 // pred_region
        _
      $region84: #{encoder_obs_forward.1} parent=67 // pred_fallthru
        _
      // Predicated region
      $region85: #{encoder_obs_forward.1} parent=67 // pred_check
        %p2054 = pneg %p316
      $region86: #{encoder_obs_forward.1} parent=67 // pred_check_branch
        %2056 = sbr.rel (%p2054) target = $region88
      $region87: #{encoder_obs_forward.1} parent=67 // pred_region
        _
      $region88: #{encoder_obs_forward.1} parent=67 // pred_fallthru
        _
    $region68: #{encoder_obs_forward.1} parent=5 // pred_fallthru
      _
    %p2057 = scmp.le.s32.totalorder 2, %s20
    // Predicated region
    $region89: #{encoder_obs_forward.1} parent=5 // pred_check
      %p2058 = pneg %p2057
    $region90: #{encoder_obs_forward.1} parent=5 // pred_check_branch
      %2060 = sbr.rel (%p2058) target = $region92
    $region91: #{encoder_obs_forward.1} parent=5 // pred_region
      %s2061 = ssub.s32 %s20, 2
    $region92: #{encoder_obs_forward.1} parent=5 // pred_fallthru
      _
  $region6: #{encoder_obs_forward.1} parent=0 // loop_footer
    %s24 = sadd.s32 1, %s20
  $region7: #{encoder_obs_forward.1} parent=0 // loop_footer_branch
    %19 = sbr.rel target = $region3
  $region8: #{encoder_obs_forward.1} parent=0 // loop_exit
    _

</llo_original>
